<compile_context>
chip_gen: v6e
topology: v6e:2x2x1
jax: 0.10.0
libtpu: 0.0.40
codegen_flags: <defaults>
</compile_context>

<pallas_src>
import functools
import math

import jax
import jax.numpy as jnp
from jax.experimental import pallas as pl
from jax.experimental.pallas import tpu as pltpu


def _spatial_transformer_kernel(x_ref, flow_ref, o_ref, *,
                                C, H, W, NB, PT, RPT, use_bf16):
    """One grid step: NB batch elements x PT output pixels.

    x_ref    : (NB, C*H, W)  input image (channel-rows stacked on sublanes)
    flow_ref : (NB, 2, PT)   flow for this pixel tile (lane-dense)
    o_ref    : (NB, C, PT)   output tile (lane-dense)
    """
    f32 = jnp.float32

    # ---- identity reference grid (in-kernel, exact) ------------------------
    # The pixel tile is either the whole image or a whole number of rows
    # (PT = RPT * W), so row/col come from the *local* iota (t < PT <= 8192,
    # far inside the f32-exact range) plus a per-step row offset.
    t = jax.lax.broadcasted_iota(jnp.int32, (1, PT), 1).astype(f32)
    local_row = jnp.floor((t + 0.5) * (1.0 / W))
    col = t - local_row * W
    row = local_row + (pl.program_id(1) * RPT).astype(f32)
    ref_x = col * (2.0 / (W - 1)) - 1.0          # linspace(-1, 1, W)[col]
    ref_y = row * (2.0 / (H - 1)) - 1.0          # linspace(-1, 1, H)[row]

    # ---- sampling grid = flow + reference, unnormalize (align_corners=False)
    flow = flow_ref[...].astype(f32)             # (NB, 2, PT)
    ix = (flow[:, 0, :] + ref_x + 1.0) * (0.5 * W) - 0.5   # (NB, PT)
    iy = (flow[:, 1, :] + ref_y + 1.0) * (0.5 * H) - 0.5

    # ---- separable bilinear "tent" masks (exact zeros padding) -------------
    # weight(tap j) = max(0, 1 - |coord - j|): non-zero only at floor(coord)
    # and floor(coord)+1 with exactly the bilinear weights; taps outside
    # [0, W-1] / [0, H-1] simply don't exist in the iota -> zero contribution.
    iota_w = jax.lax.broadcasted_iota(jnp.int32, (1, W, PT), 1).astype(f32)
    iota_h = iota_w if H == W else (
        jax.lax.broadcasted_iota(jnp.int32, (1, H, PT), 1).astype(f32))
    wxm = jnp.maximum(1.0 - jnp.abs(ix[:, None, :] - iota_w), 0.0)  # (NB,W,PT)
    wym = jnp.maximum(1.0 - jnp.abs(iy[:, None, :] - iota_h), 0.0)  # (NB,H,PT)

    # ---- x-blend on the MXU: (NB, C*H, W) @ (NB, W, PT) -> (NB, C*H, PT) ---
    xv = x_ref[...]
    if use_bf16:
        lhs = xv.astype(jnp.bfloat16)
        rhs = wxm.astype(jnp.bfloat16)
        prec = None                              # single bf16 MXU pass
    else:
        lhs = xv.astype(f32)
        rhs = wxm
        prec = jax.lax.Precision.HIGHEST         # small W: matmul negligible
    tx = jax.lax.dot_general(
        lhs, rhs,
        dimension_numbers=(((2,), (1,)), ((0,), (0,))),
        preferred_element_type=f32,
        precision=prec,
    )                                            # (NB, C*H, PT)

    # ---- y-blend: per-channel VPU multiply + sublane reduce over H ---------
    # One channel at a time keeps the largest live intermediate at (NB, H, PT)
    # instead of (NB, C, H, PT) and avoids any reshape of tx.
    outs = []
    for c in range(C):                           # static, C is small
        txc = tx[:, c * H:(c + 1) * H, :]        # (NB, H, PT)
        outs.append(jnp.sum(txc * wym, axis=1)[:, None, :])
    o_ref[...] = jnp.concatenate(outs, axis=1).astype(o_ref.dtype)


def spatial_transformer(x, flow, n_pixel):
    """JAX/Pallas equivalent of network_spatial_transformer.forward."""
    N, C, H, W = x.shape
    assert H == n_pixel and W == n_pixel and n_pixel >= 2
    assert flow.shape == (N, 2, H, W)
    P = H * W

    # Keep bf16 inputs in bf16 (halves x/out HBM traffic); otherwise f32.
    if not (x.dtype == jnp.float32 or x.dtype == jnp.bfloat16):
        x = x.astype(jnp.float32)
    out_dtype = x.dtype
    x_flat = x.reshape(N, C * H, W)                       # metadata-only reshape
    flow_flat = flow.reshape(N, 2, P).astype(jnp.float32)

    # --- generation-aware VMEM budget ---------------------------------------
    try:
        vmem_cap = int(getattr(pltpu.get_tpu_info(), "vmem_capacity_bytes",
                               64 << 20))
    except Exception:
        vmem_cap = 64 << 20                               # conservative default
    budget = min(vmem_cap // 4, 24 << 20)                 # per-step budget
    pt_cap = 8192 if vmem_cap >= (96 << 20) else 4096     # v6e/v5e vs v7x

    def _r8(v):
        return ((v + 7) // 8) * 8

    def _r128(v):
        return ((v + 127) // 128) * 128

    def footprint(nb, pt):
        # Honest per-step estimate: 2x double-buffering on the DMA'd blocks
        # plus the dominant in-kernel intermediates.
        xb = nb * _r8(C * H) * _r128(W) * 4 * 2
        fb = nb * 8 * _r128(pt) * 4 * 2
        ob = nb * _r8(C) * _r128(pt) * 4 * 2
        masks = nb * (_r8(H) + _r8(W)) * _r128(pt) * 4
        tx = nb * _r8(C * H) * _r128(pt) * 4
        prod = nb * _r8(H) * _r128(pt) * 4
        misc = nb * 4 * 8 * _r128(pt) * 4
        return xb + fb + ob + masks + tx + prod + misc

    # --- pixel tile: whole image, or a lane-aligned whole number of rows ----
    if P <= pt_cap:
        PT, RPT = P, H
    else:
        step = 128 // math.gcd(W, 128)            # rows per lane-aligned unit
        unit = step * W
        if unit >= P:
            PT, RPT = P, H                        # can't tile usefully
        else:
            k = max(1, min(pt_cap // unit, -(-H // step)))
            while k > 1 and footprint(1, k * unit) > budget:
                k -= 1
            RPT = k * step
            PT = RPT * W

    # --- batch fold: largest divisor of N whose footprint fits the budget ---
    NB = 1
    for d in range(N, 0, -1):
        if N % d == 0 and footprint(d, PT) <= budget:
            NB = d
            break

    # --- guarantee >= 2 parallel grid steps for v7x's two TensorCores -------
    n_pt = -(-P // PT)
    if (N // NB) * n_pt == 1 and N * C * H * W >= (1 << 14):
        if NB >= 2 and NB % 2 == 0:
            NB //= 2
        elif RPT >= 2 and RPT % 2 == 0 and ((RPT // 2) * W) % 128 == 0:
            RPT //= 2
            PT = RPT * W

    # --- pad the pixel axis so PT tiles it exactly (padding is discarded) ---
    n_pt = -(-P // PT)
    P_pad = n_pt * PT
    if P_pad > P:
        flow_flat = jnp.pad(flow_flat, ((0, 0), (0, 0), (0, P_pad - P)))

    grid = (N // NB, n_pt)
    use_bf16 = W >= 128                            # bf16 only when MXU matters
    kernel = functools.partial(_spatial_transformer_kernel, C=C, H=H, W=W,
                               NB=NB, PT=PT, RPT=RPT, use_bf16=use_bf16)

    vmem_limit = int(min(int(vmem_cap * 0.9),
                         max(2 * footprint(NB, PT), 32 << 20)))

    out_flat = pl.pallas_call(
        kernel,
        out_shape=jax.ShapeDtypeStruct((N, C, P_pad), out_dtype),
        grid_spec=pltpu.PrefetchScalarGridSpec(
            num_scalar_prefetch=0,
            grid=grid,
            in_specs=[
                pl.BlockSpec((NB, C * H, W), lambda nb, pt: (nb, 0, 0)),
                pl.BlockSpec((NB, 2, PT), lambda nb, pt: (nb, 0, pt)),
            ],
            out_specs=pl.BlockSpec((NB, C, PT), lambda nb, pt: (nb, 0, pt)),
        ),
        compiler_params=pltpu.CompilerParams(
            dimension_semantics=("parallel", "parallel"),
            vmem_limit_bytes=vmem_limit),
    )(x_flat, flow_flat)

    out = out_flat[:, :, :P] if P_pad > P else out_flat
    return out.reshape(N, C, H, W)


def grid_sample_ref(x, grid):
    """Pure-JAX reference of F.grid_sample (bilinear, zeros, align_corners=False)."""
    N, C, H, W = x.shape
    gx = grid[..., 0]
    gy = grid[..., 1]
    ix = ((gx + 1.0) * W - 1.0) / 2.0
    iy = ((gy + 1.0) * H - 1.0) / 2.0
    x0 = jnp.floor(ix)
    x1 = x0 + 1.0
    y0 = jnp.floor(iy)
    y1 = y0 + 1.0
    wx1 = ix - x0
    wx0 = 1.0 - wx1
    wy1 = iy - y0
    wy0 = 1.0 - wy1
    xf = x.reshape(N, C, H * W)

    def corner(yy, xx, w):
        valid = (yy >= 0) & (yy <= H - 1) & (xx >= 0) & (xx <= W - 1)
        yyi = jnp.clip(yy, 0, H - 1).astype(jnp.int32)
        xxi = jnp.clip(xx, 0, W - 1).astype(jnp.int32)
        idx = (yyi * W + xxi).reshape(N, -1)                    # (N, P)
        gathered = jax.vmap(lambda a, i: a[:, i])(xf, idx)      # (N, C, P)
        wv = (w * valid.astype(w.dtype)).reshape(N, 1, -1)
        return gathered * wv

    out = (corner(y0, x0, wy0 * wx0) + corner(y0, x1, wy0 * wx1)
           + corner(y1, x0, wy1 * wx0) + corner(y1, x1, wy1 * wx1))
    return out.reshape(N, C, grid.shape[1], grid.shape[2])


if __name__ == "__main__":
    n_pixel = 16
    N, C = 2, 4

    key = jax.random.PRNGKey(0)
    k1, k2 = jax.random.split(key)
    x = jax.random.normal(k1, (N, C, n_pixel, n_pixel), dtype=jnp.float32)
    flow = 0.2 * jax.random.normal(k2, (N, 2, n_pixel, n_pixel), dtype=jnp.float32)

    out = spatial_transformer(x, flow, n_pixel)
    out = jax.block_until_ready(out)

    # Cross-check against a pure-JAX grid_sample reference (same semantics as
    # the PyTorch module: reference grid from meshgrid('ij'), ref[...,0]=Y,
    # ref[...,1]=X, bilinear, zeros padding, align_corners=False).
    lin = jnp.linspace(-1.0, 1.0, n_pixel, dtype=jnp.float32)
    X, Y = jnp.meshgrid(lin, lin, indexing="ij")
    reference = jnp.stack([Y, X], axis=-1)                       # (H, W, 2)
    grid = jnp.transpose(flow, (0, 2, 3, 1)) + reference[None]
    ref_out = grid_sample_ref(x, grid)

    err = float(jnp.max(jnp.abs(out - ref_out)))
    assert jnp.allclose(out, ref_out, atol=1e-3, rtol=1e-3), f"max abs err = {err}"
    print("KERNEL_OK")
</pallas_src>

<mosaic_0001>
module attributes {stable_mosaic.version = 11 : i64} {
  func.func @_spatial_transformer_kernel(%arg0: i32, %arg1: i32, %arg2: memref<2x64x16xf32, #tpu.memory_space<vmem>>, %arg3: memref<2x2x256xf32, #tpu.memory_space<vmem>>, %arg4: memref<2x4x256xf32, #tpu.memory_space<vmem>>) attributes {dimension_semantics = [#tpu.dimension_semantics<parallel>, #tpu.dimension_semantics<parallel>], iteration_bounds = array<i64: 1, 1>, scalar_prefetch = 0 : i64, scratch_operands = 0 : i64, tpu.core_type = #tpu.core_type<tc>, window_params = [{transform_indices = @transform_0, window_bounds = array<i64: 2, 64, 16>}, {transform_indices = @transform_1, window_bounds = array<i64: 2, 2, 256>}, {transform_indices = @transform_2, window_bounds = array<i64: 2, 4, 256>}]} {
    %0 = tpu.iota {dimensions = array<i32: 1>} : vector<1x256xi32>
    %1 = arith.sitofp %0 : vector<1x256xi32> to vector<1x256xf32>
    %cst = arith.constant 5.000000e-01 : f32
    %2 = vector.broadcast %cst : f32 to vector<1x256xf32>
    %3 = arith.addf %1, %2 : vector<1x256xf32>
    %cst_0 = arith.constant 6.250000e-02 : f32
    %4 = vector.broadcast %cst_0 : f32 to vector<1x256xf32>
    %5 = arith.mulf %3, %4 : vector<1x256xf32>
    %6 = math.floor %5 : vector<1x256xf32>
    %cst_1 = arith.constant 1.600000e+01 : f32
    %7 = vector.broadcast %cst_1 : f32 to vector<1x256xf32>
    %8 = arith.mulf %6, %7 : vector<1x256xf32>
    %9 = arith.subf %1, %8 : vector<1x256xf32>
    %c16_i32 = arith.constant 16 : i32
    %10 = arith.muli %arg1, %c16_i32 : i32
    %11 = arith.sitofp %10 : i32 to f32
    %12 = vector.broadcast %11 : f32 to vector<1x256xf32>
    %13 = arith.addf %6, %12 : vector<1x256xf32>
    %cst_2 = arith.constant 0.13333334 : f32
    %14 = vector.broadcast %cst_2 : f32 to vector<1x256xf32>
    %15 = arith.mulf %9, %14 : vector<1x256xf32>
    %cst_3 = arith.constant 1.000000e+00 : f32
    %16 = vector.broadcast %cst_3 : f32 to vector<1x256xf32>
    %17 = arith.subf %15, %16 : vector<1x256xf32>
    %cst_4 = arith.constant 0.13333334 : f32
    %18 = vector.broadcast %cst_4 : f32 to vector<1x256xf32>
    %19 = arith.mulf %13, %18 : vector<1x256xf32>
    %cst_5 = arith.constant 1.000000e+00 : f32
    %20 = vector.broadcast %cst_5 : f32 to vector<1x256xf32>
    %21 = arith.subf %19, %20 : vector<1x256xf32>
    %c0 = arith.constant 0 : index
    %c0_6 = arith.constant 0 : index
    %c0_7 = arith.constant 0 : index
    %22 = vector.load %arg3[%c0, %c0_6, %c0_7] : memref<2x2x256xf32, #tpu.memory_space<vmem>>, vector<2x2x256xf32>
    %23 = vector.extract_strided_slice %22 {offsets = [0, 0, 0], sizes = [2, 1, 256], strides = [1, 1, 1]} : vector<2x2x256xf32> to vector<2x1x256xf32>
    %24 = vector.shape_cast %23 : vector<2x1x256xf32> to vector<2x256xf32>
    %25 = vector.broadcast %17 : vector<1x256xf32> to vector<2x256xf32>
    %26 = arith.addf %24, %25 : vector<2x256xf32>
    %cst_8 = arith.constant 1.000000e+00 : f32
    %27 = vector.broadcast %cst_8 : f32 to vector<2x256xf32>
    %28 = arith.addf %26, %27 : vector<2x256xf32>
    %cst_9 = arith.constant 8.000000e+00 : f32
    %29 = vector.broadcast %cst_9 : f32 to vector<2x256xf32>
    %30 = arith.mulf %28, %29 : vector<2x256xf32>
    %cst_10 = arith.constant 5.000000e-01 : f32
    %31 = vector.broadcast %cst_10 : f32 to vector<2x256xf32>
    %32 = arith.subf %30, %31 : vector<2x256xf32>
    %33 = vector.extract_strided_slice %22 {offsets = [0, 1, 0], sizes = [2, 1, 256], strides = [1, 1, 1]} : vector<2x2x256xf32> to vector<2x1x256xf32>
    %34 = vector.shape_cast %33 : vector<2x1x256xf32> to vector<2x256xf32>
    %35 = vector.broadcast %21 : vector<1x256xf32> to vector<2x256xf32>
    %36 = arith.addf %34, %35 : vector<2x256xf32>
    %cst_11 = arith.constant 1.000000e+00 : f32
    %37 = vector.broadcast %cst_11 : f32 to vector<2x256xf32>
    %38 = arith.addf %36, %37 : vector<2x256xf32>
    %cst_12 = arith.constant 8.000000e+00 : f32
    %39 = vector.broadcast %cst_12 : f32 to vector<2x256xf32>
    %40 = arith.mulf %38, %39 : vector<2x256xf32>
    %cst_13 = arith.constant 5.000000e-01 : f32
    %41 = vector.broadcast %cst_13 : f32 to vector<2x256xf32>
    %42 = arith.subf %40, %41 : vector<2x256xf32>
    %43 = tpu.iota {dimensions = array<i32: 1>} : vector<1x16x256xi32>
    %44 = arith.sitofp %43 : vector<1x16x256xi32> to vector<1x16x256xf32>
    %45 = vector.shape_cast %32 : vector<2x256xf32> to vector<2x1x256xf32>
    %46 = vector.broadcast %45 : vector<2x1x256xf32> to vector<2x16x256xf32>
    %47 = vector.broadcast %44 : vector<1x16x256xf32> to vector<2x16x256xf32>
    %48 = arith.subf %46, %47 : vector<2x16x256xf32>
    %49 = math.absf %48 : vector<2x16x256xf32>
    %cst_14 = arith.constant 1.000000e+00 : f32
    %50 = vector.broadcast %cst_14 : f32 to vector<2x16x256xf32>
    %51 = arith.subf %50, %49 : vector<2x16x256xf32>
    %cst_15 = arith.constant 0.000000e+00 : f32
    %52 = vector.broadcast %cst_15 : f32 to vector<2x16x256xf32>
    %53 = arith.maximumf %51, %52 : vector<2x16x256xf32>
    %54 = vector.shape_cast %42 : vector<2x256xf32> to vector<2x1x256xf32>
    %55 = vector.broadcast %54 : vector<2x1x256xf32> to vector<2x16x256xf32>
    %56 = vector.broadcast %44 : vector<1x16x256xf32> to vector<2x16x256xf32>
    %57 = arith.subf %55, %56 : vector<2x16x256xf32>
    %58 = math.absf %57 : vector<2x16x256xf32>
    %cst_16 = arith.constant 1.000000e+00 : f32
    %59 = vector.broadcast %cst_16 : f32 to vector<2x16x256xf32>
    %60 = arith.subf %59, %58 : vector<2x16x256xf32>
    %cst_17 = arith.constant 0.000000e+00 : f32
    %61 = vector.broadcast %cst_17 : f32 to vector<2x16x256xf32>
    %62 = arith.maximumf %60, %61 : vector<2x16x256xf32>
    %c0_18 = arith.constant 0 : index
    %c0_19 = arith.constant 0 : index
    %c0_20 = arith.constant 0 : index
    %63 = vector.load %arg2[%c0_18, %c0_19, %c0_20] : memref<2x64x16xf32, #tpu.memory_space<vmem>>, vector<2x64x16xf32>
    %cst_21 = arith.constant dense<0.000000e+00> : vector<2x64x256xf32>
    %64 = tpu.matmul %63, %53, %cst_21 {dimension_numbers = #tpu.dot_dimension_numbers<[2], [1], [1], [2], [0, 0, 0, 1, 1, 2], [0], [0]>, precision = #tpu.contract_precision<fp32>} : vector<2x64x16xf32>, vector<2x16x256xf32>, vector<2x64x256xf32> -> vector<2x64x256xf32>
    %65 = vector.extract_strided_slice %64 {offsets = [0, 0, 0], sizes = [2, 16, 256], strides = [1, 1, 1]} : vector<2x64x256xf32> to vector<2x16x256xf32>
    %66 = arith.mulf %65, %62 : vector<2x16x256xf32>
    %cst_22 = arith.constant dense<0.000000e+00> : vector<2x256xf32>
    %67 = vector.multi_reduction <add>, %66, %cst_22 [1] : vector<2x16x256xf32> to vector<2x256xf32>
    %68 = vector.shape_cast %67 : vector<2x256xf32> to vector<2x1x256xf32>
    %69 = vector.extract_strided_slice %64 {offsets = [0, 16, 0], sizes = [2, 16, 256], strides = [1, 1, 1]} : vector<2x64x256xf32> to vector<2x16x256xf32>
    %70 = arith.mulf %69, %62 : vector<2x16x256xf32>
    %cst_23 = arith.constant dense<0.000000e+00> : vector<2x256xf32>
    %71 = vector.multi_reduction <add>, %70, %cst_23 [1] : vector<2x16x256xf32> to vector<2x256xf32>
    %72 = vector.shape_cast %71 : vector<2x256xf32> to vector<2x1x256xf32>
    %73 = vector.extract_strided_slice %64 {offsets = [0, 32, 0], sizes = [2, 16, 256], strides = [1, 1, 1]} : vector<2x64x256xf32> to vector<2x16x256xf32>
    %74 = arith.mulf %73, %62 : vector<2x16x256xf32>
    %cst_24 = arith.constant dense<0.000000e+00> : vector<2x256xf32>
    %75 = vector.multi_reduction <add>, %74, %cst_24 [1] : vector<2x16x256xf32> to vector<2x256xf32>
    %76 = vector.shape_cast %75 : vector<2x256xf32> to vector<2x1x256xf32>
    %77 = vector.extract_strided_slice %64 {offsets = [0, 48, 0], sizes = [2, 16, 256], strides = [1, 1, 1]} : vector<2x64x256xf32> to vector<2x16x256xf32>
    %78 = arith.mulf %77, %62 : vector<2x16x256xf32>
    %cst_25 = arith.constant dense<0.000000e+00> : vector<2x256xf32>
    %79 = vector.multi_reduction <add>, %78, %cst_25 [1] : vector<2x16x256xf32> to vector<2x256xf32>
    %80 = vector.shape_cast %79 : vector<2x256xf32> to vector<2x1x256xf32>
    %81 = tpu.concatenate %68, %72, %76, %80 in 1 : vector<2x1x256xf32>, vector<2x1x256xf32>, vector<2x1x256xf32>, vector<2x1x256xf32> -> vector<2x4x256xf32>
    %c0_26 = arith.constant 0 : index
    %c0_27 = arith.constant 0 : index
    %c0_28 = arith.constant 0 : index
    %82 = vector.load %arg4[%c0_26, %c0_27, %c0_28] : memref<2x4x256xf32, #tpu.memory_space<vmem>>, vector<2x4x256xf32>
    tpu.vector_store %arg4[%c0_26, %c0_27, %c0_28], %81 {strides = array<i32>} : memref<2x4x256xf32, #tpu.memory_space<vmem>>, vector<2x4x256xf32>,
    return
  }
  func.func @transform_0(%arg0: i32, %arg1: i32) -> (i32, i32, i32) {
    %c0_i32 = arith.constant 0 : i32
    %c0_i32_0 = arith.constant 0 : i32
    %c0_i32_1 = arith.constant 0 : i32
    return %arg0, %c0_i32, %c0_i32_0 : i32, i32, i32
  }
  func.func @transform_1(%arg0: i32, %arg1: i32) -> (i32, i32, i32) {
    %c0_i32 = arith.constant 0 : i32
    %c0_i32_0 = arith.constant 0 : i32
    return %arg0, %c0_i32, %arg1 : i32, i32, i32
  }
  func.func @transform_2(%arg0: i32, %arg1: i32) -> (i32, i32, i32) {
    %c0_i32 = arith.constant 0 : i32
    %c0_i32_0 = arith.constant 0 : i32
    return %arg0, %c0_i32, %arg1 : i32, i32, i32
  }
}

</mosaic_0001>

<llo_original>
// kernel: tpu_custom_call.1
$region0: #{tpu_custom_call.1}
  #allocation0 [shape = 'u32[]', space=smem, size = 0x4, offset = 0x4, fixed_abs, tag = 'smem constant byte address 0x4 - core index']
  #allocation1 [shape = 'u32[144,128]{1,0:T(1,128)}', space=vmem, size = 0x12000, scoped, tag = 'internal scratch']
  %s0 = inlined_call_operand.vmem [shape: f32[2,64,16], index: 0, kind: input, shape index: {}]
  %s1 = inlined_call_operand.vmem [shape: f32[2,2,256], index: 1, kind: input, shape index: {}]
  %s2 = inlined_call_operand.hbm [shape: f32[2,4,256], index: 2, kind: output, shape index: {}]
  %s3 = sld [smem:[#allocation0]]
  $region18: #{tpu_custom_call.1} parent=0
    _
  %s5 = ssub.s32 1, %s3
  %s6 = scalar_select 0, %s5, %s3
  $region1: #{tpu_custom_call.1} parent=0
    #allocation2 [shape = 'u8[8192]{0}', space=vmem, size = 0x2000, scoped, tag = 'output window, operand 0, single buffered']
    #allocation3 [shape = 's32[1]{0}', space=sflag, size = 0x4, scoped, tag = 'scoped memory for tpu_custom_call.1']
    %7 = vsyncpa [#allocation3], 0
    // Predicated region
    $region2: #{tpu_custom_call.1} parent=1 // pred_check
      _
    $region3: #{tpu_custom_call.1} parent=1 // pred_check_branch
      %9 = sbr.rel (0) target = $region5
    $region4: #{tpu_custom_call.1} parent=1 // pred_region
      _
    $region5: #{tpu_custom_call.1} parent=1 // pred_fallthru
      _
    // Predicated region
    $region6: #{tpu_custom_call.1} parent=1 // pred_check
      _
    $region7: #{tpu_custom_call.1} parent=1 // pred_check_branch
      %11 = sbr.rel (0) target = $region9
    $region8: #{tpu_custom_call.1} parent=1 // pred_region
      _
    $region9: #{tpu_custom_call.1} parent=1 // pred_fallthru
      _
    %v12 = vlaneseq
    %v13 = vand.u32 %v12, 127
    %v14 = vadd.s32 %v13, 128
    %v15 = vcvt.s32.f32 %v13
    %v16 = vcvt.s32.f32 %v14
    %v17 = vadd.f32 %v15, 0.5
    %v18 = vadd.f32 %v16, 0.5
    %v19 = vmul.f32 %v17, 0.0625
    %v20 = vmul.f32 %v18, 0.0625
    %v21 = vfloor.f32 %v19
    %v22 = vfloor.f32 %v20
    %v23 = vmul.f32 %v21, 16.0
    %v24 = vmul.f32 %v22, 16.0
    %v25 = vsub.f32 %v15, %v23
    %v26 = vsub.f32 %v16, %v24
    %s27 = smul.u32 0, 16
    %s28 = scvt.s32.f32 %s27
    %v29 = vstv %s28
    %v30 = vadd.f32 %v21, %v29
    %v31 = vadd.f32 %v22, %v29
    %v32 = vmul.f32 %v25, 0.13333334
    %v33 = vmul.f32 %v26, 0.13333334
    %v34 = vsub.f32 %v32, 1.0
    %v35 = vsub.f32 %v33, 1.0
    %v36 = vmul.f32 %v30, 0.13333334
    %v37 = vmul.f32 %v31, 0.13333334
    %v38 = vsub.f32 %v36, 1.0
    %v39 = vsub.f32 %v37, 1.0
    %v40 = vld [vmem:[%s1] sm:$0xf]
    %v41 = vld [vmem:[%s1 + $0x4] sm:$0xf]
    %v44 = vcombine.low %v34, %v35
    %v46 = vunpack.c.l.s4 1983009808
    %v47 = vunpack.c.0.s8 %v46
    %v48 = vlaneseq
    %v49 = vshrl.u32 %v48, 7
    %v50 = vsub.s32 %v47, %v49
    %v51 = vrot.slane %v44, %v50
    %v52 = vrot.slane %v51, 1
    %v55 = vadd.f32 %v40, %v51
    %v56 = vadd.f32 %v41, %v52
    %v57 = vadd.f32 %v55, 1.0
    %v58 = vadd.f32 %v56, 1.0
    %v59 = vmul.f32 %v57, 8.0
    %v60 = vmul.f32 %v58, 8.0
    %v61 = vsub.f32 %v59, 0.5
    %v62 = vsub.f32 %v60, 0.5
    %v65 = vcombine.low %v38, %v39
    %v67 = vunpack.c.l.s4 1983009808
    %v68 = vunpack.c.0.s8 %v67
    %v69 = vlaneseq
    %v70 = vshrl.u32 %v69, 7
    %v71 = vsub.s32 %v68, %v70
    %v72 = vrot.slane %v65, %v71
    %v73 = vrot.slane %v72, 7
    %v76 = vadd.f32 %v40, %v73
    %v77 = vadd.f32 %v41, %v72
    %v78 = vadd.f32 %v76, 1.0
    %v79 = vadd.f32 %v77, 1.0
    %v80 = vmul.f32 %v78, 8.0
    %v81 = vmul.f32 %v79, 8.0
    %v82 = vsub.f32 %v80, 0.5
    %v83 = vsub.f32 %v81, 0.5
    %v84 = vlaneseq
    %v85 = vshrl.u32 %v84, 7
    %v86 = vadd.s32 %v85, 8
    %v87 = vcvt.s32.f32 %v85
    %v88 = vcvt.s32.f32 %v86
    %v91 = vlaneseq
    %v92 = vshrl.u32 %v91, 7
    %v93 = vsub.s32 0, %v92
    %v94 = vrot.slane %v61, %v93
    %v95 = vlaneseq
    %v96 = vshrl.u32 %v95, 7
    %v97 = vsub.s32 2, %v96
    %v98 = vrot.slane %v61, %v97
    %v99 = vlaneseq
    %v100 = vshrl.u32 %v99, 7
    %v101 = vsub.s32 0, %v100
    %v102 = vrot.slane %v62, %v101
    %v103 = vlaneseq
    %v104 = vshrl.u32 %v103, 7
    %v105 = vsub.s32 2, %v104
    %v106 = vrot.slane %v62, %v105
    %v111 = vlaneseq
    %v112 = vshrl.u32 %v111, 7
    %v113 = vsub.s32 0, %v112
    %v114 = vrot.slane %v94, %v113
    %v115 = vlaneseq
    %v116 = vshrl.u32 %v115, 7
    %v117 = vsub.s32 0, %v116
    %v118 = vrot.slane %v98, %v117
    %v119 = vlaneseq
    %v120 = vshrl.u32 %v119, 7
    %v121 = vsub.s32 0, %v120
    %v122 = vrot.slane %v102, %v121
    %v123 = vlaneseq
    %v124 = vshrl.u32 %v123, 7
    %v125 = vsub.s32 0, %v124
    %v126 = vrot.slane %v106, %v125
    %v127 = vsub.f32 %v114, %v87
    %v128 = vsub.f32 %v118, %v87
    %v129 = vsub.f32 %v114, %v88
    %v130 = vsub.f32 %v118, %v88
    %v131 = vsub.f32 %v122, %v87
    %v132 = vsub.f32 %v126, %v87
    %v133 = vsub.f32 %v122, %v88
    %v134 = vsub.f32 %v126, %v88
    %v135 = vand.u32 2147483647, %v127
    %v136 = vand.u32 2147483647, %v128
    %v137 = vand.u32 2147483647, %v129
    %v138 = vand.u32 2147483647, %v130
    %v139 = vand.u32 2147483647, %v131
    %v140 = vand.u32 2147483647, %v132
    %v141 = vand.u32 2147483647, %v133
    %v142 = vand.u32 2147483647, %v134
    %v143 = vsub.f32 1.0, %v135
    %v144 = vsub.f32 1.0, %v136
    %v145 = vsub.f32 1.0, %v137
    %v146 = vsub.f32 1.0, %v138
    %v147 = vsub.f32 1.0, %v139
    %v148 = vsub.f32 1.0, %v140
    %v149 = vsub.f32 1.0, %v141
    %v150 = vsub.f32 1.0, %v142
    %v151 = vmax.f32 %v143, 0.0
    %v152 = vmax.f32 %v144, 0.0
    %v153 = vmax.f32 %v145, 0.0
    %v154 = vmax.f32 %v146, 0.0
    %v155 = vmax.f32 %v147, 0.0
    %v156 = vmax.f32 %v148, 0.0
    %v157 = vmax.f32 %v149, 0.0
    %v158 = vmax.f32 %v150, 0.0
    %v161 = vlaneseq
    %v162 = vshrl.u32 %v161, 7
    %v163 = vsub.s32 1, %v162
    %v164 = vrot.slane %v82, %v163
    %v165 = vlaneseq
    %v166 = vshrl.u32 %v165, 7
    %v167 = vsub.s32 3, %v166
    %v168 = vrot.slane %v82, %v167
    %v169 = vlaneseq
    %v170 = vshrl.u32 %v169, 7
    %v171 = vsub.s32 1, %v170
    %v172 = vrot.slane %v83, %v171
    %v173 = vlaneseq
    %v174 = vshrl.u32 %v173, 7
    %v175 = vsub.s32 3, %v174
    %v176 = vrot.slane %v83, %v175
    %v181 = vlaneseq
    %v182 = vshrl.u32 %v181, 7
    %v183 = vsub.s32 1, %v182
    %v184 = vrot.slane %v164, %v183
    %v185 = vlaneseq
    %v186 = vshrl.u32 %v185, 7
    %v187 = vsub.s32 1, %v186
    %v188 = vrot.slane %v168, %v187
    %v189 = vlaneseq
    %v190 = vshrl.u32 %v189, 7
    %v191 = vsub.s32 1, %v190
    %v192 = vrot.slane %v172, %v191
    %v193 = vlaneseq
    %v194 = vshrl.u32 %v193, 7
    %v195 = vsub.s32 1, %v194
    %v196 = vrot.slane %v176, %v195
    %v197 = vsub.f32 %v184, %v87
    %v198 = vsub.f32 %v188, %v87
    %v199 = vsub.f32 %v184, %v88
    %v200 = vsub.f32 %v188, %v88
    %v201 = vsub.f32 %v192, %v87
    %v202 = vsub.f32 %v196, %v87
    %v203 = vsub.f32 %v192, %v88
    %v204 = vsub.f32 %v196, %v88
    %v205 = vand.u32 2147483647, %v197
    %v206 = vand.u32 2147483647, %v198
    %v207 = vand.u32 2147483647, %v199
    %v208 = vand.u32 2147483647, %v200
    %v209 = vand.u32 2147483647, %v201
    %v210 = vand.u32 2147483647, %v202
    %v211 = vand.u32 2147483647, %v203
    %v212 = vand.u32 2147483647, %v204
    %v213 = vsub.f32 1.0, %v205
    %v214 = vsub.f32 1.0, %v206
    %v215 = vsub.f32 1.0, %v207
    %v216 = vsub.f32 1.0, %v208
    %v217 = vsub.f32 1.0, %v209
    %v218 = vsub.f32 1.0, %v210
    %v219 = vsub.f32 1.0, %v211
    %v220 = vsub.f32 1.0, %v212
    %v221 = vmax.f32 %v213, 0.0
    %v222 = vmax.f32 %v214, 0.0
    %v223 = vmax.f32 %v215, 0.0
    %v224 = vmax.f32 %v216, 0.0
    %v225 = vmax.f32 %v217, 0.0
    %v226 = vmax.f32 %v218, 0.0
    %v227 = vmax.f32 %v219, 0.0
    %v228 = vmax.f32 %v220, 0.0
    %v229 = vld [vmem:[%s0] sm:$0xff]
    %v230 = vld [vmem:[%s0 + $0x8] sm:$0xff]
    %v231 = vld [vmem:[%s0 + $0x10] sm:$0xff]
    %v232 = vld [vmem:[%s0 + $0x18] sm:$0xff]
    %v233 = vld [vmem:[%s0 + $0x20] sm:$0xff]
    %v234 = vld [vmem:[%s0 + $0x28] sm:$0xff]
    %v235 = vld [vmem:[%s0 + $0x30] sm:$0xff]
    %v236 = vld [vmem:[%s0 + $0x38] sm:$0xff]
    %v237 = vld [vmem:[%s0 + $0x40] sm:$0xff]
    %v238 = vld [vmem:[%s0 + $0x48] sm:$0xff]
    %v239 = vld [vmem:[%s0 + $0x50] sm:$0xff]
    %v240 = vld [vmem:[%s0 + $0x58] sm:$0xff]
    %v241 = vld [vmem:[%s0 + $0x60] sm:$0xff]
    %v242 = vld [vmem:[%s0 + $0x68] sm:$0xff]
    %v243 = vld [vmem:[%s0 + $0x70] sm:$0xff]
    %v244 = vld [vmem:[%s0 + $0x78] sm:$0xff]
    %vm245 = vcmask 130048
    %v247 = vsel %vm245, %v229, 0
    %v250 = vsel %vm245, %v230, 0
    %v253 = vsel %vm245, %v231, 0
    %v256 = vsel %vm245, %v232, 0
    %v259 = vsel %vm245, %v233, 0
    %v262 = vsel %vm245, %v234, 0
    %v265 = vsel %vm245, %v235, 0
    %v268 = vsel %vm245, %v236, 0
    %270 = vmatprep.subr.mxu0 0.0
    %271 = vmatpush1.msra.mxu0 0.0
    %272 = vmatprep.subr.mxu0 0.0
    %273 = vmatpush1.msra.mxu0 0.0
    %274 = vmatprep.subr.mxu0 0.0
    %275 = vmatpush1.msra.mxu0 0.0
    %276 = vmatprep.subr.mxu0 0.0
    %277 = vmatpush1.msra.mxu0 0.0
    %278 = vmatprep.subr.mxu0 0.0
    %279 = vmatpush1.msra.mxu0 0.0
    %280 = vmatprep.subr.mxu0 0.0
    %281 = vmatpush1.msra.mxu0 0.0
    %282 = vmatprep.subr.mxu0 0.0
    %283 = vmatpush1.msra.mxu0 0.0
    %284 = vmatprep.subr.mxu0 0.0
    %285 = vmatpush1.msra.mxu0 0.0
    %286 = vmatprep.subr.mxu0 0.0
    %287 = vmatpush1.msra.mxu0 0.0
    %288 = vmatprep.subr.mxu0 0.0
    %289 = vmatpush1.msra.mxu0 0.0
    %290 = vmatprep.subr.mxu0 0.0
    %291 = vmatpush1.msra.mxu0 0.0
    %292 = vmatprep.subr.mxu0 0.0
    %293 = vmatpush1.msra.mxu0 0.0
    %294 = vmatprep.subr.mxu0 0.0
    %295 = vmatpush1.msra.mxu0 0.0
    %296 = vmatprep.subr.mxu0 0.0
    %297 = vmatpush1.msra.mxu0 0.0
    %v298 = vand.u32 %v154, 4294901760
    %299 = vmatprep.subr.mxu0 %v298
    %v300 = vand.u32 %v153, 4294901760
    %301 = vmatpush1.msra.mxu0 %v300
    %v302 = vand.u32 %v152, 4294901760
    %303 = vmatprep.subr.mxu0 %v302
    %v304 = vand.u32 %v151, 4294901760
    %305 = vmatpush1.msra.mxu0 %v304
    %306 = vmatprep.subr.mxu0 0.0
    %307 = vmatpush2.msra.mxu0 0.0
    %308 = vmatprep.subr.mxu0 0.0
    %309 = vmatpush2.msra.mxu0 0.0
    %310 = vmatprep.subr.mxu0 0.0
    %311 = vmatpush2.msra.mxu0 0.0
    %312 = vmatprep.subr.mxu0 0.0
    %313 = vmatpush2.msra.mxu0 0.0
    %314 = vmatprep.subr.mxu0 0.0
    %315 = vmatpush2.msra.mxu0 0.0
    %316 = vmatprep.subr.mxu0 0.0
    %317 = vmatpush2.msra.mxu0 0.0
    %318 = vmatprep.subr.mxu0 0.0
    %319 = vmatpush2.msra.mxu0 0.0
    %320 = vmatprep.subr.mxu0 0.0
    %321 = vmatpush2.msra.mxu0 0.0
    %322 = vmatprep.subr.mxu0 0.0
    %323 = vmatpush2.msra.mxu0 0.0
    %324 = vmatprep.subr.mxu0 0.0
    %325 = vmatpush2.msra.mxu0 0.0
    %326 = vmatprep.subr.mxu0 0.0
    %327 = vmatpush2.msra.mxu0 0.0
    %328 = vmatprep.subr.mxu0 0.0
    %329 = vmatpush2.msra.mxu0 0.0
    %330 = vmatprep.subr.mxu0 0.0
    %331 = vmatpush2.msra.mxu0 0.0
    %332 = vmatprep.subr.mxu0 0.0
    %333 = vmatpush2.msra.mxu0 0.0
    %334 = vmatprep.subr.mxu0 0.0
    %335 = vmatpush2.msra.mxu0 0.0
    %336 = vmatprep.subr.mxu0 0.0
    %337 = vmatpush2.msra.mxu0 0.0
    %338 = vmatprep.mubr.f32.mxu0 0.0
    %v339 = vand.u32 %v247, 4294901760
    %v340 = vsub.f32 %v247, %v339
    %v341 = vand.u32 %v340, 4294901760
    %v342 = vsub.f32 %v340, %v341
    %v343 = vand.u32 %v342, 4294901760
    %344 = vmatmul.mubr.f32.gmra.mxu0 %v343
    %v345 = vpop.f32.mrf.mxu0
    %v346 = vadd.f32 0.0, %v345
    %v347 = vpop.f32.mrf.mxu0
    %v348 = vadd.f32 0.0, %v347
    %349 = vmatprep.mubr.f32.mxu0 0.0
    %v350 = vand.u32 %v250, 4294901760
    %v351 = vsub.f32 %v250, %v350
    %v352 = vand.u32 %v351, 4294901760
    %v353 = vsub.f32 %v351, %v352
    %v354 = vand.u32 %v353, 4294901760
    %355 = vmatmul.mubr.f32.gmra.mxu0 %v354
    %v356 = vpop.f32.mrf.mxu0
    %v357 = vadd.f32 0.0, %v356
    %v358 = vpop.f32.mrf.mxu0
    %v359 = vadd.f32 0.0, %v358
    %360 = vmatprep.mubr.f32.mxu0 0.0
    %v361 = vand.u32 %v253, 4294901760
    %v362 = vsub.f32 %v253, %v361
    %v363 = vand.u32 %v362, 4294901760
    %v364 = vsub.f32 %v362, %v363
    %v365 = vand.u32 %v364, 4294901760
    %366 = vmatmul.mubr.f32.gmra.mxu0 %v365
    %v367 = vpop.f32.mrf.mxu0
    %v368 = vadd.f32 0.0, %v367
    %v369 = vpop.f32.mrf.mxu0
    %v370 = vadd.f32 0.0, %v369
    %371 = vmatprep.mubr.f32.mxu0 0.0
    %v372 = vand.u32 %v256, 4294901760
    %v373 = vsub.f32 %v256, %v372
    %v374 = vand.u32 %v373, 4294901760
    %v375 = vsub.f32 %v373, %v374
    %v376 = vand.u32 %v375, 4294901760
    %377 = vmatmul.mubr.f32.gmra.mxu0 %v376
    %v378 = vpop.f32.mrf.mxu0
    %v379 = vadd.f32 0.0, %v378
    %v380 = vpop.f32.mrf.mxu0
    %v381 = vadd.f32 0.0, %v380
    %382 = vmatprep.mubr.f32.mxu0 0.0
    %v383 = vand.u32 %v259, 4294901760
    %v384 = vsub.f32 %v259, %v383
    %v385 = vand.u32 %v384, 4294901760
    %v386 = vsub.f32 %v384, %v385
    %v387 = vand.u32 %v386, 4294901760
    %388 = vmatmul.mubr.f32.gmra.mxu0 %v387
    %v389 = vpop.f32.mrf.mxu0
    %v390 = vadd.f32 0.0, %v389
    %v391 = vpop.f32.mrf.mxu0
    %v392 = vadd.f32 0.0, %v391
    %393 = vmatprep.mubr.f32.mxu0 0.0
    %v394 = vand.u32 %v262, 4294901760
    %v395 = vsub.f32 %v262, %v394
    %v396 = vand.u32 %v395, 4294901760
    %v397 = vsub.f32 %v395, %v396
    %v398 = vand.u32 %v397, 4294901760
    %399 = vmatmul.mubr.f32.gmra.mxu0 %v398
    %v400 = vpop.f32.mrf.mxu0
    %v401 = vadd.f32 0.0, %v400
    %v402 = vpop.f32.mrf.mxu0
    %v403 = vadd.f32 0.0, %v402
    %404 = vmatprep.mubr.f32.mxu0 0.0
    %v405 = vand.u32 %v265, 4294901760
    %v406 = vsub.f32 %v265, %v405
    %v407 = vand.u32 %v406, 4294901760
    %v408 = vsub.f32 %v406, %v407
    %v409 = vand.u32 %v408, 4294901760
    %410 = vmatmul.mubr.f32.gmra.mxu0 %v409
    %v411 = vpop.f32.mrf.mxu0
    %v412 = vadd.f32 0.0, %v411
    %v413 = vpop.f32.mrf.mxu0
    %v414 = vadd.f32 0.0, %v413
    %415 = vmatprep.mubr.f32.mxu0 0.0
    %v416 = vand.u32 %v268, 4294901760
    %v417 = vsub.f32 %v268, %v416
    %v418 = vand.u32 %v417, 4294901760
    %v419 = vsub.f32 %v417, %v418
    %v420 = vand.u32 %v419, 4294901760
    %421 = vmatmul.mubr.f32.gmra.mxu0 %v420
    %v422 = vpop.f32.mrf.mxu0
    %v423 = vadd.f32 0.0, %v422
    %v424 = vpop.f32.mrf.mxu0
    %v425 = vadd.f32 0.0, %v424
    %426 = vdwg.mxu0
    %427 = vmatprep.subr.mxu0 0.0
    %428 = vmatpush1.msra.mxu0 0.0
    %429 = vmatprep.subr.mxu0 0.0
    %430 = vmatpush1.msra.mxu0 0.0
    %431 = vmatprep.subr.mxu0 0.0
    %432 = vmatpush1.msra.mxu0 0.0
    %433 = vmatprep.subr.mxu0 0.0
    %434 = vmatpush1.msra.mxu0 0.0
    %435 = vmatprep.subr.mxu0 0.0
    %436 = vmatpush1.msra.mxu0 0.0
    %437 = vmatprep.subr.mxu0 0.0
    %438 = vmatpush1.msra.mxu0 0.0
    %439 = vmatprep.subr.mxu0 0.0
    %440 = vmatpush1.msra.mxu0 0.0
    %441 = vmatprep.subr.mxu0 0.0
    %442 = vmatpush1.msra.mxu0 0.0
    %443 = vmatprep.subr.mxu0 0.0
    %444 = vmatpush1.msra.mxu0 0.0
    %445 = vmatprep.subr.mxu0 0.0
    %446 = vmatpush1.msra.mxu0 0.0
    %447 = vmatprep.subr.mxu0 0.0
    %448 = vmatpush1.msra.mxu0 0.0
    %449 = vmatprep.subr.mxu0 0.0
    %450 = vmatpush1.msra.mxu0 0.0
    %451 = vmatprep.subr.mxu0 0.0
    %452 = vmatpush1.msra.mxu0 0.0
    %453 = vmatprep.subr.mxu0 0.0
    %454 = vmatpush1.msra.mxu0 0.0
    %v455 = vand.u32 %v154, 4294901760
    %v456 = vsub.f32 %v154, %v455
    %v457 = vand.u32 %v456, 4294901760
    %v458 = vsub.f32 %v456, %v457
    %v459 = vand.u32 %v458, 4294901760
    %460 = vmatprep.subr.mxu0 %v459
    %v461 = vand.u32 %v153, 4294901760
    %v462 = vsub.f32 %v153, %v461
    %v463 = vand.u32 %v462, 4294901760
    %v464 = vsub.f32 %v462, %v463
    %v465 = vand.u32 %v464, 4294901760
    %466 = vmatpush1.msra.mxu0 %v465
    %v467 = vand.u32 %v152, 4294901760
    %v468 = vsub.f32 %v152, %v467
    %v469 = vand.u32 %v468, 4294901760
    %v470 = vsub.f32 %v468, %v469
    %v471 = vand.u32 %v470, 4294901760
    %472 = vmatprep.subr.mxu0 %v471
    %v473 = vand.u32 %v151, 4294901760
    %v474 = vsub.f32 %v151, %v473
    %v475 = vand.u32 %v474, 4294901760
    %v476 = vsub.f32 %v474, %v475
    %v477 = vand.u32 %v476, 4294901760
    %478 = vmatpush1.msra.mxu0 %v477
    %479 = vmatprep.subr.mxu0 0.0
    %480 = vmatpush2.msra.mxu0 0.0
    %481 = vmatprep.subr.mxu0 0.0
    %482 = vmatpush2.msra.mxu0 0.0
    %483 = vmatprep.subr.mxu0 0.0
    %484 = vmatpush2.msra.mxu0 0.0
    %485 = vmatprep.subr.mxu0 0.0
    %486 = vmatpush2.msra.mxu0 0.0
    %487 = vmatprep.subr.mxu0 0.0
    %488 = vmatpush2.msra.mxu0 0.0
    %489 = vmatprep.subr.mxu0 0.0
    %490 = vmatpush2.msra.mxu0 0.0
    %491 = vmatprep.subr.mxu0 0.0
    %492 = vmatpush2.msra.mxu0 0.0
    %493 = vmatprep.subr.mxu0 0.0
    %494 = vmatpush2.msra.mxu0 0.0
    %495 = vmatprep.subr.mxu0 0.0
    %496 = vmatpush2.msra.mxu0 0.0
    %497 = vmatprep.subr.mxu0 0.0
    %498 = vmatpush2.msra.mxu0 0.0
    %499 = vmatprep.subr.mxu0 0.0
    %500 = vmatpush2.msra.mxu0 0.0
    %501 = vmatprep.subr.mxu0 0.0
    %502 = vmatpush2.msra.mxu0 0.0
    %503 = vmatprep.subr.mxu0 0.0
    %504 = vmatpush2.msra.mxu0 0.0
    %505 = vmatprep.subr.mxu0 0.0
    %506 = vmatpush2.msra.mxu0 0.0
    %507 = vmatprep.subr.mxu0 0.0
    %508 = vmatpush2.msra.mxu0 0.0
    %509 = vmatprep.subr.mxu0 0.0
    %510 = vmatpush2.msra.mxu0 0.0
    %511 = vmatprep.mubr.f32.mxu0 0.0
    %v512 = vand.u32 %v247, 4294901760
    %513 = vmatmul.mubr.f32.gmra.mxu0 %v512
    %v514 = vpop.f32.mrf.mxu0
    %v515 = vadd.f32 %v346, %v514
    %v516 = vpop.f32.mrf.mxu0
    %v517 = vadd.f32 %v348, %v516
    %518 = vmatprep.mubr.f32.mxu0 0.0
    %v519 = vand.u32 %v250, 4294901760
    %520 = vmatmul.mubr.f32.gmra.mxu0 %v519
    %v521 = vpop.f32.mrf.mxu0
    %v522 = vadd.f32 %v357, %v521
    %v523 = vpop.f32.mrf.mxu0
    %v524 = vadd.f32 %v359, %v523
    %525 = vmatprep.mubr.f32.mxu0 0.0
    %v526 = vand.u32 %v253, 4294901760
    %527 = vmatmul.mubr.f32.gmra.mxu0 %v526
    %v528 = vpop.f32.mrf.mxu0
    %v529 = vadd.f32 %v368, %v528
    %v530 = vpop.f32.mrf.mxu0
    %v531 = vadd.f32 %v370, %v530
    %532 = vmatprep.mubr.f32.mxu0 0.0
    %v533 = vand.u32 %v256, 4294901760
    %534 = vmatmul.mubr.f32.gmra.mxu0 %v533
    %v535 = vpop.f32.mrf.mxu0
    %v536 = vadd.f32 %v379, %v535
    %v537 = vpop.f32.mrf.mxu0
    %v538 = vadd.f32 %v381, %v537
    %539 = vmatprep.mubr.f32.mxu0 0.0
    %v540 = vand.u32 %v259, 4294901760
    %541 = vmatmul.mubr.f32.gmra.mxu0 %v540
    %v542 = vpop.f32.mrf.mxu0
    %v543 = vadd.f32 %v390, %v542
    %v544 = vpop.f32.mrf.mxu0
    %v545 = vadd.f32 %v392, %v544
    %546 = vmatprep.mubr.f32.mxu0 0.0
    %v547 = vand.u32 %v262, 4294901760
    %548 = vmatmul.mubr.f32.gmra.mxu0 %v547
    %v549 = vpop.f32.mrf.mxu0
    %v550 = vadd.f32 %v401, %v549
    %v551 = vpop.f32.mrf.mxu0
    %v552 = vadd.f32 %v403, %v551
    %553 = vmatprep.mubr.f32.mxu0 0.0
    %v554 = vand.u32 %v265, 4294901760
    %555 = vmatmul.mubr.f32.gmra.mxu0 %v554
    %v556 = vpop.f32.mrf.mxu0
    %v557 = vadd.f32 %v412, %v556
    %v558 = vpop.f32.mrf.mxu0
    %v559 = vadd.f32 %v414, %v558
    %560 = vmatprep.mubr.f32.mxu0 0.0
    %v561 = vand.u32 %v268, 4294901760
    %562 = vmatmul.mubr.f32.gmra.mxu0 %v561
    %v563 = vpop.f32.mrf.mxu0
    %v564 = vadd.f32 %v423, %v563
    %v565 = vpop.f32.mrf.mxu0
    %v566 = vadd.f32 %v425, %v565
    %567 = vdwg.mxu0
    %568 = vmatprep.subr.mxu0 0.0
    %569 = vmatpush1.msra.mxu0 0.0
    %570 = vmatprep.subr.mxu0 0.0
    %571 = vmatpush1.msra.mxu0 0.0
    %572 = vmatprep.subr.mxu0 0.0
    %573 = vmatpush1.msra.mxu0 0.0
    %574 = vmatprep.subr.mxu0 0.0
    %575 = vmatpush1.msra.mxu0 0.0
    %576 = vmatprep.subr.mxu0 0.0
    %577 = vmatpush1.msra.mxu0 0.0
    %578 = vmatprep.subr.mxu0 0.0
    %579 = vmatpush1.msra.mxu0 0.0
    %580 = vmatprep.subr.mxu0 0.0
    %581 = vmatpush1.msra.mxu0 0.0
    %582 = vmatprep.subr.mxu0 0.0
    %583 = vmatpush1.msra.mxu0 0.0
    %584 = vmatprep.subr.mxu0 0.0
    %585 = vmatpush1.msra.mxu0 0.0
    %586 = vmatprep.subr.mxu0 0.0
    %587 = vmatpush1.msra.mxu0 0.0
    %588 = vmatprep.subr.mxu0 0.0
    %589 = vmatpush1.msra.mxu0 0.0
    %590 = vmatprep.subr.mxu0 0.0
    %591 = vmatpush1.msra.mxu0 0.0
    %592 = vmatprep.subr.mxu0 0.0
    %593 = vmatpush1.msra.mxu0 0.0
    %594 = vmatprep.subr.mxu0 0.0
    %595 = vmatpush1.msra.mxu0 0.0
    %v596 = vand.u32 %v154, 4294901760
    %v597 = vsub.f32 %v154, %v596
    %598 = vmatprep.subr.mxu0 %v597
    %v599 = vand.u32 %v153, 4294901760
    %v600 = vsub.f32 %v153, %v599
    %601 = vmatpush1.msra.mxu0 %v600
    %v602 = vand.u32 %v152, 4294901760
    %v603 = vsub.f32 %v152, %v602
    %604 = vmatprep.subr.mxu0 %v603
    %v605 = vand.u32 %v151, 4294901760
    %v606 = vsub.f32 %v151, %v605
    %607 = vmatpush1.msra.mxu0 %v606
    %608 = vmatprep.subr.mxu0 0.0
    %609 = vmatpush2.msra.mxu0 0.0
    %610 = vmatprep.subr.mxu0 0.0
    %611 = vmatpush2.msra.mxu0 0.0
    %612 = vmatprep.subr.mxu0 0.0
    %613 = vmatpush2.msra.mxu0 0.0
    %614 = vmatprep.subr.mxu0 0.0
    %615 = vmatpush2.msra.mxu0 0.0
    %616 = vmatprep.subr.mxu0 0.0
    %617 = vmatpush2.msra.mxu0 0.0
    %618 = vmatprep.subr.mxu0 0.0
    %619 = vmatpush2.msra.mxu0 0.0
    %620 = vmatprep.subr.mxu0 0.0
    %621 = vmatpush2.msra.mxu0 0.0
    %622 = vmatprep.subr.mxu0 0.0
    %623 = vmatpush2.msra.mxu0 0.0
    %624 = vmatprep.subr.mxu0 0.0
    %625 = vmatpush2.msra.mxu0 0.0
    %626 = vmatprep.subr.mxu0 0.0
    %627 = vmatpush2.msra.mxu0 0.0
    %628 = vmatprep.subr.mxu0 0.0
    %629 = vmatpush2.msra.mxu0 0.0
    %630 = vmatprep.subr.mxu0 0.0
    %631 = vmatpush2.msra.mxu0 0.0
    %632 = vmatprep.subr.mxu0 0.0
    %633 = vmatpush2.msra.mxu0 0.0
    %634 = vmatprep.subr.mxu0 0.0
    %635 = vmatpush2.msra.mxu0 0.0
    %636 = vmatprep.subr.mxu0 0.0
    %637 = vmatpush2.msra.mxu0 0.0
    %638 = vmatprep.subr.mxu0 0.0
    %639 = vmatpush2.msra.mxu0 0.0
    %640 = vmatprep.mubr.f32.mxu0 0.0
    %v641 = vand.u32 %v247, 4294901760
    %v642 = vsub.f32 %v247, %v641
    %643 = vmatmul.mubr.f32.gmra.mxu0 %v642
    %v644 = vpop.f32.mrf.mxu0
    %v645 = vadd.f32 %v515, %v644
    %v646 = vpop.f32.mrf.mxu0
    %v647 = vadd.f32 %v517, %v646
    %648 = vmatprep.mubr.f32.mxu0 0.0
    %v649 = vand.u32 %v250, 4294901760
    %v650 = vsub.f32 %v250, %v649
    %651 = vmatmul.mubr.f32.gmra.mxu0 %v650
    %v652 = vpop.f32.mrf.mxu0
    %v653 = vadd.f32 %v522, %v652
    %v654 = vpop.f32.mrf.mxu0
    %v655 = vadd.f32 %v524, %v654
    %656 = vmatprep.mubr.f32.mxu0 0.0
    %v657 = vand.u32 %v253, 4294901760
    %v658 = vsub.f32 %v253, %v657
    %659 = vmatmul.mubr.f32.gmra.mxu0 %v658
    %v660 = vpop.f32.mrf.mxu0
    %v661 = vadd.f32 %v529, %v660
    %v662 = vpop.f32.mrf.mxu0
    %v663 = vadd.f32 %v531, %v662
    %664 = vmatprep.mubr.f32.mxu0 0.0
    %v665 = vand.u32 %v256, 4294901760
    %v666 = vsub.f32 %v256, %v665
    %667 = vmatmul.mubr.f32.gmra.mxu0 %v666
    %v668 = vpop.f32.mrf.mxu0
    %v669 = vadd.f32 %v536, %v668
    %v670 = vpop.f32.mrf.mxu0
    %v671 = vadd.f32 %v538, %v670
    %672 = vmatprep.mubr.f32.mxu0 0.0
    %v673 = vand.u32 %v259, 4294901760
    %v674 = vsub.f32 %v259, %v673
    %675 = vmatmul.mubr.f32.gmra.mxu0 %v674
    %v676 = vpop.f32.mrf.mxu0
    %v677 = vadd.f32 %v543, %v676
    %v678 = vpop.f32.mrf.mxu0
    %v679 = vadd.f32 %v545, %v678
    %680 = vmatprep.mubr.f32.mxu0 0.0
    %v681 = vand.u32 %v262, 4294901760
    %v682 = vsub.f32 %v262, %v681
    %683 = vmatmul.mubr.f32.gmra.mxu0 %v682
    %v684 = vpop.f32.mrf.mxu0
    %v685 = vadd.f32 %v550, %v684
    %v686 = vpop.f32.mrf.mxu0
    %v687 = vadd.f32 %v552, %v686
    %688 = vmatprep.mubr.f32.mxu0 0.0
    %v689 = vand.u32 %v265, 4294901760
    %v690 = vsub.f32 %v265, %v689
    %691 = vmatmul.mubr.f32.gmra.mxu0 %v690
    %v692 = vpop.f32.mrf.mxu0
    %v693 = vadd.f32 %v557, %v692
    %v694 = vpop.f32.mrf.mxu0
    %v695 = vadd.f32 %v559, %v694
    %696 = vmatprep.mubr.f32.mxu0 0.0
    %v697 = vand.u32 %v268, 4294901760
    %v698 = vsub.f32 %v268, %v697
    %699 = vmatmul.mubr.f32.gmra.mxu0 %v698
    %v700 = vpop.f32.mrf.mxu0
    %v701 = vadd.f32 %v564, %v700
    %v702 = vpop.f32.mrf.mxu0
    %v703 = vadd.f32 %v566, %v702
    %704 = vdwg.mxu0
    %705 = vmatprep.subr.mxu0 0.0
    %706 = vmatpush1.msra.mxu0 0.0
    %707 = vmatprep.subr.mxu0 0.0
    %708 = vmatpush1.msra.mxu0 0.0
    %709 = vmatprep.subr.mxu0 0.0
    %710 = vmatpush1.msra.mxu0 0.0
    %711 = vmatprep.subr.mxu0 0.0
    %712 = vmatpush1.msra.mxu0 0.0
    %713 = vmatprep.subr.mxu0 0.0
    %714 = vmatpush1.msra.mxu0 0.0
    %715 = vmatprep.subr.mxu0 0.0
    %716 = vmatpush1.msra.mxu0 0.0
    %717 = vmatprep.subr.mxu0 0.0
    %718 = vmatpush1.msra.mxu0 0.0
    %719 = vmatprep.subr.mxu0 0.0
    %720 = vmatpush1.msra.mxu0 0.0
    %721 = vmatprep.subr.mxu0 0.0
    %722 = vmatpush1.msra.mxu0 0.0
    %723 = vmatprep.subr.mxu0 0.0
    %724 = vmatpush1.msra.mxu0 0.0
    %725 = vmatprep.subr.mxu0 0.0
    %726 = vmatpush1.msra.mxu0 0.0
    %727 = vmatprep.subr.mxu0 0.0
    %728 = vmatpush1.msra.mxu0 0.0
    %729 = vmatprep.subr.mxu0 0.0
    %730 = vmatpush1.msra.mxu0 0.0
    %731 = vmatprep.subr.mxu0 0.0
    %732 = vmatpush1.msra.mxu0 0.0
    %v733 = vand.u32 %v154, 4294901760
    %734 = vmatprep.subr.mxu0 %v733
    %v735 = vand.u32 %v153, 4294901760
    %736 = vmatpush1.msra.mxu0 %v735
    %v737 = vand.u32 %v152, 4294901760
    %738 = vmatprep.subr.mxu0 %v737
    %v739 = vand.u32 %v151, 4294901760
    %740 = vmatpush1.msra.mxu0 %v739
    %741 = vmatprep.subr.mxu0 0.0
    %742 = vmatpush2.msra.mxu0 0.0
    %743 = vmatprep.subr.mxu0 0.0
    %744 = vmatpush2.msra.mxu0 0.0
    %745 = vmatprep.subr.mxu0 0.0
    %746 = vmatpush2.msra.mxu0 0.0
    %747 = vmatprep.subr.mxu0 0.0
    %748 = vmatpush2.msra.mxu0 0.0
    %749 = vmatprep.subr.mxu0 0.0
    %750 = vmatpush2.msra.mxu0 0.0
    %751 = vmatprep.subr.mxu0 0.0
    %752 = vmatpush2.msra.mxu0 0.0
    %753 = vmatprep.subr.mxu0 0.0
    %754 = vmatpush2.msra.mxu0 0.0
    %755 = vmatprep.subr.mxu0 0.0
    %756 = vmatpush2.msra.mxu0 0.0
    %757 = vmatprep.subr.mxu0 0.0
    %758 = vmatpush2.msra.mxu0 0.0
    %759 = vmatprep.subr.mxu0 0.0
    %760 = vmatpush2.msra.mxu0 0.0
    %761 = vmatprep.subr.mxu0 0.0
    %762 = vmatpush2.msra.mxu0 0.0
    %763 = vmatprep.subr.mxu0 0.0
    %764 = vmatpush2.msra.mxu0 0.0
    %765 = vmatprep.subr.mxu0 0.0
    %766 = vmatpush2.msra.mxu0 0.0
    %767 = vmatprep.subr.mxu0 0.0
    %768 = vmatpush2.msra.mxu0 0.0
    %769 = vmatprep.subr.mxu0 0.0
    %770 = vmatpush2.msra.mxu0 0.0
    %771 = vmatprep.subr.mxu0 0.0
    %772 = vmatpush2.msra.mxu0 0.0
    %773 = vmatprep.mubr.f32.mxu0 0.0
    %v774 = vand.u32 %v247, 4294901760
    %v775 = vsub.f32 %v247, %v774
    %v776 = vand.u32 %v775, 4294901760
    %777 = vmatmul.mubr.f32.gmra.mxu0 %v776
    %v778 = vpop.f32.mrf.mxu0
    %v779 = vadd.f32 %v645, %v778
    %v780 = vpop.f32.mrf.mxu0
    %v781 = vadd.f32 %v647, %v780
    %782 = vmatprep.mubr.f32.mxu0 0.0
    %v783 = vand.u32 %v250, 4294901760
    %v784 = vsub.f32 %v250, %v783
    %v785 = vand.u32 %v784, 4294901760
    %786 = vmatmul.mubr.f32.gmra.mxu0 %v785
    %v787 = vpop.f32.mrf.mxu0
    %v788 = vadd.f32 %v653, %v787
    %v789 = vpop.f32.mrf.mxu0
    %v790 = vadd.f32 %v655, %v789
    %791 = vmatprep.mubr.f32.mxu0 0.0
    %v792 = vand.u32 %v253, 4294901760
    %v793 = vsub.f32 %v253, %v792
    %v794 = vand.u32 %v793, 4294901760
    %795 = vmatmul.mubr.f32.gmra.mxu0 %v794
    %v796 = vpop.f32.mrf.mxu0
    %v797 = vadd.f32 %v661, %v796
    %v798 = vpop.f32.mrf.mxu0
    %v799 = vadd.f32 %v663, %v798
    %800 = vmatprep.mubr.f32.mxu0 0.0
    %v801 = vand.u32 %v256, 4294901760
    %v802 = vsub.f32 %v256, %v801
    %v803 = vand.u32 %v802, 4294901760
    %804 = vmatmul.mubr.f32.gmra.mxu0 %v803
    %v805 = vpop.f32.mrf.mxu0
    %v806 = vadd.f32 %v669, %v805
    %v807 = vpop.f32.mrf.mxu0
    %v808 = vadd.f32 %v671, %v807
    %809 = vmatprep.mubr.f32.mxu0 0.0
    %v810 = vand.u32 %v259, 4294901760
    %v811 = vsub.f32 %v259, %v810
    %v812 = vand.u32 %v811, 4294901760
    %813 = vmatmul.mubr.f32.gmra.mxu0 %v812
    %v814 = vpop.f32.mrf.mxu0
    %v815 = vadd.f32 %v677, %v814
    %v816 = vpop.f32.mrf.mxu0
    %v817 = vadd.f32 %v679, %v816
    %818 = vmatprep.mubr.f32.mxu0 0.0
    %v819 = vand.u32 %v262, 4294901760
    %v820 = vsub.f32 %v262, %v819
    %v821 = vand.u32 %v820, 4294901760
    %822 = vmatmul.mubr.f32.gmra.mxu0 %v821
    %v823 = vpop.f32.mrf.mxu0
    %v824 = vadd.f32 %v685, %v823
    %v825 = vpop.f32.mrf.mxu0
    %v826 = vadd.f32 %v687, %v825
    %827 = vmatprep.mubr.f32.mxu0 0.0
    %v828 = vand.u32 %v265, 4294901760
    %v829 = vsub.f32 %v265, %v828
    %v830 = vand.u32 %v829, 4294901760
    %831 = vmatmul.mubr.f32.gmra.mxu0 %v830
    %v832 = vpop.f32.mrf.mxu0
    %v833 = vadd.f32 %v693, %v832
    %v834 = vpop.f32.mrf.mxu0
    %v835 = vadd.f32 %v695, %v834
    %836 = vmatprep.mubr.f32.mxu0 0.0
    %v837 = vand.u32 %v268, 4294901760
    %v838 = vsub.f32 %v268, %v837
    %v839 = vand.u32 %v838, 4294901760
    %840 = vmatmul.mubr.f32.gmra.mxu0 %v839
    %v841 = vpop.f32.mrf.mxu0
    %v842 = vadd.f32 %v701, %v841
    %v843 = vpop.f32.mrf.mxu0
    %v844 = vadd.f32 %v703, %v843
    %845 = vdwg.mxu0
    %846 = vmatprep.subr.mxu0 0.0
    %847 = vmatpush1.msra.mxu0 0.0
    %848 = vmatprep.subr.mxu0 0.0
    %849 = vmatpush1.msra.mxu0 0.0
    %850 = vmatprep.subr.mxu0 0.0
    %851 = vmatpush1.msra.mxu0 0.0
    %852 = vmatprep.subr.mxu0 0.0
    %853 = vmatpush1.msra.mxu0 0.0
    %854 = vmatprep.subr.mxu0 0.0
    %855 = vmatpush1.msra.mxu0 0.0
    %856 = vmatprep.subr.mxu0 0.0
    %857 = vmatpush1.msra.mxu0 0.0
    %858 = vmatprep.subr.mxu0 0.0
    %859 = vmatpush1.msra.mxu0 0.0
    %860 = vmatprep.subr.mxu0 0.0
    %861 = vmatpush1.msra.mxu0 0.0
    %862 = vmatprep.subr.mxu0 0.0
    %863 = vmatpush1.msra.mxu0 0.0
    %864 = vmatprep.subr.mxu0 0.0
    %865 = vmatpush1.msra.mxu0 0.0
    %866 = vmatprep.subr.mxu0 0.0
    %867 = vmatpush1.msra.mxu0 0.0
    %868 = vmatprep.subr.mxu0 0.0
    %869 = vmatpush1.msra.mxu0 0.0
    %870 = vmatprep.subr.mxu0 0.0
    %871 = vmatpush1.msra.mxu0 0.0
    %872 = vmatprep.subr.mxu0 0.0
    %873 = vmatpush1.msra.mxu0 0.0
    %v874 = vand.u32 %v154, 4294901760
    %v875 = vsub.f32 %v154, %v874
    %v876 = vand.u32 %v875, 4294901760
    %877 = vmatprep.subr.mxu0 %v876
    %v878 = vand.u32 %v153, 4294901760
    %v879 = vsub.f32 %v153, %v878
    %v880 = vand.u32 %v879, 4294901760
    %881 = vmatpush1.msra.mxu0 %v880
    %v882 = vand.u32 %v152, 4294901760
    %v883 = vsub.f32 %v152, %v882
    %v884 = vand.u32 %v883, 4294901760
    %885 = vmatprep.subr.mxu0 %v884
    %v886 = vand.u32 %v151, 4294901760
    %v887 = vsub.f32 %v151, %v886
    %v888 = vand.u32 %v887, 4294901760
    %889 = vmatpush1.msra.mxu0 %v888
    %890 = vmatprep.subr.mxu0 0.0
    %891 = vmatpush2.msra.mxu0 0.0
    %892 = vmatprep.subr.mxu0 0.0
    %893 = vmatpush2.msra.mxu0 0.0
    %894 = vmatprep.subr.mxu0 0.0
    %895 = vmatpush2.msra.mxu0 0.0
    %896 = vmatprep.subr.mxu0 0.0
    %897 = vmatpush2.msra.mxu0 0.0
    %898 = vmatprep.subr.mxu0 0.0
    %899 = vmatpush2.msra.mxu0 0.0
    %900 = vmatprep.subr.mxu0 0.0
    %901 = vmatpush2.msra.mxu0 0.0
    %902 = vmatprep.subr.mxu0 0.0
    %903 = vmatpush2.msra.mxu0 0.0
    %904 = vmatprep.subr.mxu0 0.0
    %905 = vmatpush2.msra.mxu0 0.0
    %906 = vmatprep.subr.mxu0 0.0
    %907 = vmatpush2.msra.mxu0 0.0
    %908 = vmatprep.subr.mxu0 0.0
    %909 = vmatpush2.msra.mxu0 0.0
    %910 = vmatprep.subr.mxu0 0.0
    %911 = vmatpush2.msra.mxu0 0.0
    %912 = vmatprep.subr.mxu0 0.0
    %913 = vmatpush2.msra.mxu0 0.0
    %914 = vmatprep.subr.mxu0 0.0
    %915 = vmatpush2.msra.mxu0 0.0
    %916 = vmatprep.subr.mxu0 0.0
    %917 = vmatpush2.msra.mxu0 0.0
    %918 = vmatprep.subr.mxu0 0.0
    %919 = vmatpush2.msra.mxu0 0.0
    %920 = vmatprep.subr.mxu0 0.0
    %921 = vmatpush2.msra.mxu0 0.0
    %922 = vmatprep.mubr.f32.mxu0 0.0
    %v923 = vand.u32 %v247, 4294901760
    %924 = vmatmul.mubr.f32.gmra.mxu0 %v923
    %v925 = vpop.f32.mrf.mxu0
    %v926 = vadd.f32 %v779, %v925
    %v927 = vpop.f32.mrf.mxu0
    %v928 = vadd.f32 %v781, %v927
    %929 = vmatprep.mubr.f32.mxu0 0.0
    %v930 = vand.u32 %v250, 4294901760
    %931 = vmatmul.mubr.f32.gmra.mxu0 %v930
    %v932 = vpop.f32.mrf.mxu0
    %v933 = vadd.f32 %v788, %v932
    %v934 = vpop.f32.mrf.mxu0
    %v935 = vadd.f32 %v790, %v934
    %936 = vmatprep.mubr.f32.mxu0 0.0
    %v937 = vand.u32 %v253, 4294901760
    %938 = vmatmul.mubr.f32.gmra.mxu0 %v937
    %v939 = vpop.f32.mrf.mxu0
    %v940 = vadd.f32 %v797, %v939
    %v941 = vpop.f32.mrf.mxu0
    %v942 = vadd.f32 %v799, %v941
    %943 = vmatprep.mubr.f32.mxu0 0.0
    %v944 = vand.u32 %v256, 4294901760
    %945 = vmatmul.mubr.f32.gmra.mxu0 %v944
    %v946 = vpop.f32.mrf.mxu0
    %v947 = vadd.f32 %v806, %v946
    %v948 = vpop.f32.mrf.mxu0
    %v949 = vadd.f32 %v808, %v948
    %950 = vmatprep.mubr.f32.mxu0 0.0
    %v951 = vand.u32 %v259, 4294901760
    %952 = vmatmul.mubr.f32.gmra.mxu0 %v951
    %v953 = vpop.f32.mrf.mxu0
    %v954 = vadd.f32 %v815, %v953
    %v955 = vpop.f32.mrf.mxu0
    %v956 = vadd.f32 %v817, %v955
    %957 = vmatprep.mubr.f32.mxu0 0.0
    %v958 = vand.u32 %v262, 4294901760
    %959 = vmatmul.mubr.f32.gmra.mxu0 %v958
    %v960 = vpop.f32.mrf.mxu0
    %v961 = vadd.f32 %v824, %v960
    %v962 = vpop.f32.mrf.mxu0
    %v963 = vadd.f32 %v826, %v962
    %964 = vmatprep.mubr.f32.mxu0 0.0
    %v965 = vand.u32 %v265, 4294901760
    %966 = vmatmul.mubr.f32.gmra.mxu0 %v965
    %v967 = vpop.f32.mrf.mxu0
    %v968 = vadd.f32 %v833, %v967
    %v969 = vpop.f32.mrf.mxu0
    %v970 = vadd.f32 %v835, %v969
    %971 = vmatprep.mubr.f32.mxu0 0.0
    %v972 = vand.u32 %v268, 4294901760
    %973 = vmatmul.mubr.f32.gmra.mxu0 %v972
    %v974 = vpop.f32.mrf.mxu0
    %v975 = vadd.f32 %v842, %v974
    %v976 = vpop.f32.mrf.mxu0
    %v977 = vadd.f32 %v844, %v976
    %978 = vdwg.mxu0
    %979 = vmatprep.subr.mxu0 0.0
    %980 = vmatpush1.msra.mxu0 0.0
    %981 = vmatprep.subr.mxu0 0.0
    %982 = vmatpush1.msra.mxu0 0.0
    %983 = vmatprep.subr.mxu0 0.0
    %984 = vmatpush1.msra.mxu0 0.0
    %985 = vmatprep.subr.mxu0 0.0
    %986 = vmatpush1.msra.mxu0 0.0
    %987 = vmatprep.subr.mxu0 0.0
    %988 = vmatpush1.msra.mxu0 0.0
    %989 = vmatprep.subr.mxu0 0.0
    %990 = vmatpush1.msra.mxu0 0.0
    %991 = vmatprep.subr.mxu0 0.0
    %992 = vmatpush1.msra.mxu0 0.0
    %993 = vmatprep.subr.mxu0 0.0
    %994 = vmatpush1.msra.mxu0 0.0
    %995 = vmatprep.subr.mxu0 0.0
    %996 = vmatpush1.msra.mxu0 0.0
    %997 = vmatprep.subr.mxu0 0.0
    %998 = vmatpush1.msra.mxu0 0.0
    %999 = vmatprep.subr.mxu0 0.0
    %1000 = vmatpush1.msra.mxu0 0.0
    %1001 = vmatprep.subr.mxu0 0.0
    %1002 = vmatpush1.msra.mxu0 0.0
    %1003 = vmatprep.subr.mxu0 0.0
    %1004 = vmatpush1.msra.mxu0 0.0
    %1005 = vmatprep.subr.mxu0 0.0
    %1006 = vmatpush1.msra.mxu0 0.0
    %v1007 = vand.u32 %v154, 4294901760
    %1008 = vmatprep.subr.mxu0 %v1007
    %v1009 = vand.u32 %v153, 4294901760
    %1010 = vmatpush1.msra.mxu0 %v1009
    %v1011 = vand.u32 %v152, 4294901760
    %1012 = vmatprep.subr.mxu0 %v1011
    %v1013 = vand.u32 %v151, 4294901760
    %1014 = vmatpush1.msra.mxu0 %v1013
    %1015 = vmatprep.subr.mxu0 0.0
    %1016 = vmatpush2.msra.mxu0 0.0
    %1017 = vmatprep.subr.mxu0 0.0
    %1018 = vmatpush2.msra.mxu0 0.0
    %1019 = vmatprep.subr.mxu0 0.0
    %1020 = vmatpush2.msra.mxu0 0.0
    %1021 = vmatprep.subr.mxu0 0.0
    %1022 = vmatpush2.msra.mxu0 0.0
    %1023 = vmatprep.subr.mxu0 0.0
    %1024 = vmatpush2.msra.mxu0 0.0
    %1025 = vmatprep.subr.mxu0 0.0
    %1026 = vmatpush2.msra.mxu0 0.0
    %1027 = vmatprep.subr.mxu0 0.0
    %1028 = vmatpush2.msra.mxu0 0.0
    %1029 = vmatprep.subr.mxu0 0.0
    %1030 = vmatpush2.msra.mxu0 0.0
    %1031 = vmatprep.subr.mxu0 0.0
    %1032 = vmatpush2.msra.mxu0 0.0
    %1033 = vmatprep.subr.mxu0 0.0
    %1034 = vmatpush2.msra.mxu0 0.0
    %1035 = vmatprep.subr.mxu0 0.0
    %1036 = vmatpush2.msra.mxu0 0.0
    %1037 = vmatprep.subr.mxu0 0.0
    %1038 = vmatpush2.msra.mxu0 0.0
    %1039 = vmatprep.subr.mxu0 0.0
    %1040 = vmatpush2.msra.mxu0 0.0
    %1041 = vmatprep.subr.mxu0 0.0
    %1042 = vmatpush2.msra.mxu0 0.0
    %1043 = vmatprep.subr.mxu0 0.0
    %1044 = vmatpush2.msra.mxu0 0.0
    %1045 = vmatprep.subr.mxu0 0.0
    %1046 = vmatpush2.msra.mxu0 0.0
    %1047 = vmatprep.mubr.f32.mxu0 0.0
    %v1048 = vand.u32 %v247, 4294901760
    %1049 = vmatmul.mubr.f32.gmra.mxu0 %v1048
    %v1050 = vpop.f32.mrf.mxu0
    %v1051 = vadd.f32 %v926, %v1050
    %v1052 = vpop.f32.mrf.mxu0
    %v1053 = vadd.f32 %v928, %v1052
    %1054 = vmatprep.mubr.f32.mxu0 0.0
    %v1055 = vand.u32 %v250, 4294901760
    %1056 = vmatmul.mubr.f32.gmra.mxu0 %v1055
    %v1057 = vpop.f32.mrf.mxu0
    %v1058 = vadd.f32 %v933, %v1057
    %v1059 = vpop.f32.mrf.mxu0
    %v1060 = vadd.f32 %v935, %v1059
    %1061 = vmatprep.mubr.f32.mxu0 0.0
    %v1062 = vand.u32 %v253, 4294901760
    %1063 = vmatmul.mubr.f32.gmra.mxu0 %v1062
    %v1064 = vpop.f32.mrf.mxu0
    %v1065 = vadd.f32 %v940, %v1064
    %v1066 = vpop.f32.mrf.mxu0
    %v1067 = vadd.f32 %v942, %v1066
    %1068 = vmatprep.mubr.f32.mxu0 0.0
    %v1069 = vand.u32 %v256, 4294901760
    %1070 = vmatmul.mubr.f32.gmra.mxu0 %v1069
    %v1071 = vpop.f32.mrf.mxu0
    %v1072 = vadd.f32 %v947, %v1071
    %v1073 = vpop.f32.mrf.mxu0
    %v1074 = vadd.f32 %v949, %v1073
    %1075 = vmatprep.mubr.f32.mxu0 0.0
    %v1076 = vand.u32 %v259, 4294901760
    %1077 = vmatmul.mubr.f32.gmra.mxu0 %v1076
    %v1078 = vpop.f32.mrf.mxu0
    %v1079 = vadd.f32 %v954, %v1078
    %v1080 = vpop.f32.mrf.mxu0
    %v1081 = vadd.f32 %v956, %v1080
    %1082 = vmatprep.mubr.f32.mxu0 0.0
    %v1083 = vand.u32 %v262, 4294901760
    %1084 = vmatmul.mubr.f32.gmra.mxu0 %v1083
    %v1085 = vpop.f32.mrf.mxu0
    %v1086 = vadd.f32 %v961, %v1085
    %v1087 = vpop.f32.mrf.mxu0
    %v1088 = vadd.f32 %v963, %v1087
    %1089 = vmatprep.mubr.f32.mxu0 0.0
    %v1090 = vand.u32 %v265, 4294901760
    %1091 = vmatmul.mubr.f32.gmra.mxu0 %v1090
    %v1092 = vpop.f32.mrf.mxu0
    %v1093 = vadd.f32 %v968, %v1092
    %v1094 = vpop.f32.mrf.mxu0
    %v1095 = vadd.f32 %v970, %v1094
    %1096 = vmatprep.mubr.f32.mxu0 0.0
    %v1097 = vand.u32 %v268, 4294901760
    %1098 = vmatmul.mubr.f32.gmra.mxu0 %v1097
    %v1099 = vpop.f32.mrf.mxu0
    %v1100 = vadd.f32 %v975, %v1099
    %v1101 = vpop.f32.mrf.mxu0
    %v1102 = vadd.f32 %v977, %v1101
    %1103 = vdwg.mxu0
    %v1105 = vsel %vm245, %v237, 0
    %v1108 = vsel %vm245, %v238, 0
    %v1111 = vsel %vm245, %v239, 0
    %v1114 = vsel %vm245, %v240, 0
    %v1117 = vsel %vm245, %v241, 0
    %v1120 = vsel %vm245, %v242, 0
    %v1123 = vsel %vm245, %v243, 0
    %v1126 = vsel %vm245, %v244, 0
    %1128 = vmatprep.subr.mxu0 0.0
    %1129 = vmatpush1.msra.mxu0 0.0
    %1130 = vmatprep.subr.mxu0 0.0
    %1131 = vmatpush1.msra.mxu0 0.0
    %1132 = vmatprep.subr.mxu0 0.0
    %1133 = vmatpush1.msra.mxu0 0.0
    %1134 = vmatprep.subr.mxu0 0.0
    %1135 = vmatpush1.msra.mxu0 0.0
    %1136 = vmatprep.subr.mxu0 0.0
    %1137 = vmatpush1.msra.mxu0 0.0
    %1138 = vmatprep.subr.mxu0 0.0
    %1139 = vmatpush1.msra.mxu0 0.0
    %1140 = vmatprep.subr.mxu0 0.0
    %1141 = vmatpush1.msra.mxu0 0.0
    %1142 = vmatprep.subr.mxu0 0.0
    %1143 = vmatpush1.msra.mxu0 0.0
    %1144 = vmatprep.subr.mxu0 0.0
    %1145 = vmatpush1.msra.mxu0 0.0
    %1146 = vmatprep.subr.mxu0 0.0
    %1147 = vmatpush1.msra.mxu0 0.0
    %1148 = vmatprep.subr.mxu0 0.0
    %1149 = vmatpush1.msra.mxu0 0.0
    %1150 = vmatprep.subr.mxu0 0.0
    %1151 = vmatpush1.msra.mxu0 0.0
    %1152 = vmatprep.subr.mxu0 0.0
    %1153 = vmatpush1.msra.mxu0 0.0
    %1154 = vmatprep.subr.mxu0 0.0
    %1155 = vmatpush1.msra.mxu0 0.0
    %v1156 = vand.u32 %v158, 4294901760
    %1157 = vmatprep.subr.mxu0 %v1156
    %v1158 = vand.u32 %v157, 4294901760
    %1159 = vmatpush1.msra.mxu0 %v1158
    %v1160 = vand.u32 %v156, 4294901760
    %1161 = vmatprep.subr.mxu0 %v1160
    %v1162 = vand.u32 %v155, 4294901760
    %1163 = vmatpush1.msra.mxu0 %v1162
    %1164 = vmatprep.subr.mxu0 0.0
    %1165 = vmatpush2.msra.mxu0 0.0
    %1166 = vmatprep.subr.mxu0 0.0
    %1167 = vmatpush2.msra.mxu0 0.0
    %1168 = vmatprep.subr.mxu0 0.0
    %1169 = vmatpush2.msra.mxu0 0.0
    %1170 = vmatprep.subr.mxu0 0.0
    %1171 = vmatpush2.msra.mxu0 0.0
    %1172 = vmatprep.subr.mxu0 0.0
    %1173 = vmatpush2.msra.mxu0 0.0
    %1174 = vmatprep.subr.mxu0 0.0
    %1175 = vmatpush2.msra.mxu0 0.0
    %1176 = vmatprep.subr.mxu0 0.0
    %1177 = vmatpush2.msra.mxu0 0.0
    %1178 = vmatprep.subr.mxu0 0.0
    %1179 = vmatpush2.msra.mxu0 0.0
    %1180 = vmatprep.subr.mxu0 0.0
    %1181 = vmatpush2.msra.mxu0 0.0
    %1182 = vmatprep.subr.mxu0 0.0
    %1183 = vmatpush2.msra.mxu0 0.0
    %1184 = vmatprep.subr.mxu0 0.0
    %1185 = vmatpush2.msra.mxu0 0.0
    %1186 = vmatprep.subr.mxu0 0.0
    %1187 = vmatpush2.msra.mxu0 0.0
    %1188 = vmatprep.subr.mxu0 0.0
    %1189 = vmatpush2.msra.mxu0 0.0
    %1190 = vmatprep.subr.mxu0 0.0
    %1191 = vmatpush2.msra.mxu0 0.0
    %1192 = vmatprep.subr.mxu0 0.0
    %1193 = vmatpush2.msra.mxu0 0.0
    %1194 = vmatprep.subr.mxu0 0.0
    %1195 = vmatpush2.msra.mxu0 0.0
    %1196 = vmatprep.mubr.f32.mxu0 0.0
    %v1197 = vand.u32 %v1105, 4294901760
    %v1198 = vsub.f32 %v1105, %v1197
    %v1199 = vand.u32 %v1198, 4294901760
    %v1200 = vsub.f32 %v1198, %v1199
    %v1201 = vand.u32 %v1200, 4294901760
    %1202 = vmatmul.mubr.f32.gmra.mxu0 %v1201
    %v1203 = vpop.f32.mrf.mxu0
    %v1204 = vadd.f32 0.0, %v1203
    %v1205 = vpop.f32.mrf.mxu0
    %v1206 = vadd.f32 0.0, %v1205
    %1207 = vmatprep.mubr.f32.mxu0 0.0
    %v1208 = vand.u32 %v1108, 4294901760
    %v1209 = vsub.f32 %v1108, %v1208
    %v1210 = vand.u32 %v1209, 4294901760
    %v1211 = vsub.f32 %v1209, %v1210
    %v1212 = vand.u32 %v1211, 4294901760
    %1213 = vmatmul.mubr.f32.gmra.mxu0 %v1212
    %v1214 = vpop.f32.mrf.mxu0
    %v1215 = vadd.f32 0.0, %v1214
    %v1216 = vpop.f32.mrf.mxu0
    %v1217 = vadd.f32 0.0, %v1216
    %1218 = vmatprep.mubr.f32.mxu0 0.0
    %v1219 = vand.u32 %v1111, 4294901760
    %v1220 = vsub.f32 %v1111, %v1219
    %v1221 = vand.u32 %v1220, 4294901760
    %v1222 = vsub.f32 %v1220, %v1221
    %v1223 = vand.u32 %v1222, 4294901760
    %1224 = vmatmul.mubr.f32.gmra.mxu0 %v1223
    %v1225 = vpop.f32.mrf.mxu0
    %v1226 = vadd.f32 0.0, %v1225
    %v1227 = vpop.f32.mrf.mxu0
    %v1228 = vadd.f32 0.0, %v1227
    %1229 = vmatprep.mubr.f32.mxu0 0.0
    %v1230 = vand.u32 %v1114, 4294901760
    %v1231 = vsub.f32 %v1114, %v1230
    %v1232 = vand.u32 %v1231, 4294901760
    %v1233 = vsub.f32 %v1231, %v1232
    %v1234 = vand.u32 %v1233, 4294901760
    %1235 = vmatmul.mubr.f32.gmra.mxu0 %v1234
    %v1236 = vpop.f32.mrf.mxu0
    %v1237 = vadd.f32 0.0, %v1236
    %v1238 = vpop.f32.mrf.mxu0
    %v1239 = vadd.f32 0.0, %v1238
    %1240 = vmatprep.mubr.f32.mxu0 0.0
    %v1241 = vand.u32 %v1117, 4294901760
    %v1242 = vsub.f32 %v1117, %v1241
    %v1243 = vand.u32 %v1242, 4294901760
    %v1244 = vsub.f32 %v1242, %v1243
    %v1245 = vand.u32 %v1244, 4294901760
    %1246 = vmatmul.mubr.f32.gmra.mxu0 %v1245
    %v1247 = vpop.f32.mrf.mxu0
    %v1248 = vadd.f32 0.0, %v1247
    %v1249 = vpop.f32.mrf.mxu0
    %v1250 = vadd.f32 0.0, %v1249
    %1251 = vmatprep.mubr.f32.mxu0 0.0
    %v1252 = vand.u32 %v1120, 4294901760
    %v1253 = vsub.f32 %v1120, %v1252
    %v1254 = vand.u32 %v1253, 4294901760
    %v1255 = vsub.f32 %v1253, %v1254
    %v1256 = vand.u32 %v1255, 4294901760
    %1257 = vmatmul.mubr.f32.gmra.mxu0 %v1256
    %v1258 = vpop.f32.mrf.mxu0
    %v1259 = vadd.f32 0.0, %v1258
    %v1260 = vpop.f32.mrf.mxu0
    %v1261 = vadd.f32 0.0, %v1260
    %1262 = vmatprep.mubr.f32.mxu0 0.0
    %v1263 = vand.u32 %v1123, 4294901760
    %v1264 = vsub.f32 %v1123, %v1263
    %v1265 = vand.u32 %v1264, 4294901760
    %v1266 = vsub.f32 %v1264, %v1265
    %v1267 = vand.u32 %v1266, 4294901760
    %1268 = vmatmul.mubr.f32.gmra.mxu0 %v1267
    %v1269 = vpop.f32.mrf.mxu0
    %v1270 = vadd.f32 0.0, %v1269
    %v1271 = vpop.f32.mrf.mxu0
    %v1272 = vadd.f32 0.0, %v1271
    %1273 = vmatprep.mubr.f32.mxu0 0.0
    %v1274 = vand.u32 %v1126, 4294901760
    %v1275 = vsub.f32 %v1126, %v1274
    %v1276 = vand.u32 %v1275, 4294901760
    %v1277 = vsub.f32 %v1275, %v1276
    %v1278 = vand.u32 %v1277, 4294901760
    %1279 = vmatmul.mubr.f32.gmra.mxu0 %v1278
    %v1280 = vpop.f32.mrf.mxu0
    %v1281 = vadd.f32 0.0, %v1280
    %v1282 = vpop.f32.mrf.mxu0
    %v1283 = vadd.f32 0.0, %v1282
    %1284 = vdwg.mxu0
    %1285 = vmatprep.subr.mxu0 0.0
    %1286 = vmatpush1.msra.mxu0 0.0
    %1287 = vmatprep.subr.mxu0 0.0
    %1288 = vmatpush1.msra.mxu0 0.0
    %1289 = vmatprep.subr.mxu0 0.0
    %1290 = vmatpush1.msra.mxu0 0.0
    %1291 = vmatprep.subr.mxu0 0.0
    %1292 = vmatpush1.msra.mxu0 0.0
    %1293 = vmatprep.subr.mxu0 0.0
    %1294 = vmatpush1.msra.mxu0 0.0
    %1295 = vmatprep.subr.mxu0 0.0
    %1296 = vmatpush1.msra.mxu0 0.0
    %1297 = vmatprep.subr.mxu0 0.0
    %1298 = vmatpush1.msra.mxu0 0.0
    %1299 = vmatprep.subr.mxu0 0.0
    %1300 = vmatpush1.msra.mxu0 0.0
    %1301 = vmatprep.subr.mxu0 0.0
    %1302 = vmatpush1.msra.mxu0 0.0
    %1303 = vmatprep.subr.mxu0 0.0
    %1304 = vmatpush1.msra.mxu0 0.0
    %1305 = vmatprep.subr.mxu0 0.0
    %1306 = vmatpush1.msra.mxu0 0.0
    %1307 = vmatprep.subr.mxu0 0.0
    %1308 = vmatpush1.msra.mxu0 0.0
    %1309 = vmatprep.subr.mxu0 0.0
    %1310 = vmatpush1.msra.mxu0 0.0
    %1311 = vmatprep.subr.mxu0 0.0
    %1312 = vmatpush1.msra.mxu0 0.0
    %v1313 = vand.u32 %v158, 4294901760
    %v1314 = vsub.f32 %v158, %v1313
    %v1315 = vand.u32 %v1314, 4294901760
    %v1316 = vsub.f32 %v1314, %v1315
    %v1317 = vand.u32 %v1316, 4294901760
    %1318 = vmatprep.subr.mxu0 %v1317
    %v1319 = vand.u32 %v157, 4294901760
    %v1320 = vsub.f32 %v157, %v1319
    %v1321 = vand.u32 %v1320, 4294901760
    %v1322 = vsub.f32 %v1320, %v1321
    %v1323 = vand.u32 %v1322, 4294901760
    %1324 = vmatpush1.msra.mxu0 %v1323
    %v1325 = vand.u32 %v156, 4294901760
    %v1326 = vsub.f32 %v156, %v1325
    %v1327 = vand.u32 %v1326, 4294901760
    %v1328 = vsub.f32 %v1326, %v1327
    %v1329 = vand.u32 %v1328, 4294901760
    %1330 = vmatprep.subr.mxu0 %v1329
    %v1331 = vand.u32 %v155, 4294901760
    %v1332 = vsub.f32 %v155, %v1331
    %v1333 = vand.u32 %v1332, 4294901760
    %v1334 = vsub.f32 %v1332, %v1333
    %v1335 = vand.u32 %v1334, 4294901760
    %1336 = vmatpush1.msra.mxu0 %v1335
    %1337 = vmatprep.subr.mxu0 0.0
    %1338 = vmatpush2.msra.mxu0 0.0
    %1339 = vmatprep.subr.mxu0 0.0
    %1340 = vmatpush2.msra.mxu0 0.0
    %1341 = vmatprep.subr.mxu0 0.0
    %1342 = vmatpush2.msra.mxu0 0.0
    %1343 = vmatprep.subr.mxu0 0.0
    %1344 = vmatpush2.msra.mxu0 0.0
    %1345 = vmatprep.subr.mxu0 0.0
    %1346 = vmatpush2.msra.mxu0 0.0
    %1347 = vmatprep.subr.mxu0 0.0
    %1348 = vmatpush2.msra.mxu0 0.0
    %1349 = vmatprep.subr.mxu0 0.0
    %1350 = vmatpush2.msra.mxu0 0.0
    %1351 = vmatprep.subr.mxu0 0.0
    %1352 = vmatpush2.msra.mxu0 0.0
    %1353 = vmatprep.subr.mxu0 0.0
    %1354 = vmatpush2.msra.mxu0 0.0
    %1355 = vmatprep.subr.mxu0 0.0
    %1356 = vmatpush2.msra.mxu0 0.0
    %1357 = vmatprep.subr.mxu0 0.0
    %1358 = vmatpush2.msra.mxu0 0.0
    %1359 = vmatprep.subr.mxu0 0.0
    %1360 = vmatpush2.msra.mxu0 0.0
    %1361 = vmatprep.subr.mxu0 0.0
    %1362 = vmatpush2.msra.mxu0 0.0
    %1363 = vmatprep.subr.mxu0 0.0
    %1364 = vmatpush2.msra.mxu0 0.0
    %1365 = vmatprep.subr.mxu0 0.0
    %1366 = vmatpush2.msra.mxu0 0.0
    %1367 = vmatprep.subr.mxu0 0.0
    %1368 = vmatpush2.msra.mxu0 0.0
    %1369 = vmatprep.mubr.f32.mxu0 0.0
    %v1370 = vand.u32 %v1105, 4294901760
    %1371 = vmatmul.mubr.f32.gmra.mxu0 %v1370
    %v1372 = vpop.f32.mrf.mxu0
    %v1373 = vadd.f32 %v1204, %v1372
    %v1374 = vpop.f32.mrf.mxu0
    %v1375 = vadd.f32 %v1206, %v1374
    %1376 = vmatprep.mubr.f32.mxu0 0.0
    %v1377 = vand.u32 %v1108, 4294901760
    %1378 = vmatmul.mubr.f32.gmra.mxu0 %v1377
    %v1379 = vpop.f32.mrf.mxu0
    %v1380 = vadd.f32 %v1215, %v1379
    %v1381 = vpop.f32.mrf.mxu0
    %v1382 = vadd.f32 %v1217, %v1381
    %1383 = vmatprep.mubr.f32.mxu0 0.0
    %v1384 = vand.u32 %v1111, 4294901760
    %1385 = vmatmul.mubr.f32.gmra.mxu0 %v1384
    %v1386 = vpop.f32.mrf.mxu0
    %v1387 = vadd.f32 %v1226, %v1386
    %v1388 = vpop.f32.mrf.mxu0
    %v1389 = vadd.f32 %v1228, %v1388
    %1390 = vmatprep.mubr.f32.mxu0 0.0
    %v1391 = vand.u32 %v1114, 4294901760
    %1392 = vmatmul.mubr.f32.gmra.mxu0 %v1391
    %v1393 = vpop.f32.mrf.mxu0
    %v1394 = vadd.f32 %v1237, %v1393
    %v1395 = vpop.f32.mrf.mxu0
    %v1396 = vadd.f32 %v1239, %v1395
    %1397 = vmatprep.mubr.f32.mxu0 0.0
    %v1398 = vand.u32 %v1117, 4294901760
    %1399 = vmatmul.mubr.f32.gmra.mxu0 %v1398
    %v1400 = vpop.f32.mrf.mxu0
    %v1401 = vadd.f32 %v1248, %v1400
    %v1402 = vpop.f32.mrf.mxu0
    %v1403 = vadd.f32 %v1250, %v1402
    %1404 = vmatprep.mubr.f32.mxu0 0.0
    %v1405 = vand.u32 %v1120, 4294901760
    %1406 = vmatmul.mubr.f32.gmra.mxu0 %v1405
    %v1407 = vpop.f32.mrf.mxu0
    %v1408 = vadd.f32 %v1259, %v1407
    %v1409 = vpop.f32.mrf.mxu0
    %v1410 = vadd.f32 %v1261, %v1409
    %1411 = vmatprep.mubr.f32.mxu0 0.0
    %v1412 = vand.u32 %v1123, 4294901760
    %1413 = vmatmul.mubr.f32.gmra.mxu0 %v1412
    %v1414 = vpop.f32.mrf.mxu0
    %v1415 = vadd.f32 %v1270, %v1414
    %v1416 = vpop.f32.mrf.mxu0
    %v1417 = vadd.f32 %v1272, %v1416
    %1418 = vmatprep.mubr.f32.mxu0 0.0
    %v1419 = vand.u32 %v1126, 4294901760
    %1420 = vmatmul.mubr.f32.gmra.mxu0 %v1419
    %v1421 = vpop.f32.mrf.mxu0
    %v1422 = vadd.f32 %v1281, %v1421
    %v1423 = vpop.f32.mrf.mxu0
    %v1424 = vadd.f32 %v1283, %v1423
    %1425 = vdwg.mxu0
    %1426 = vmatprep.subr.mxu0 0.0
    %1427 = vmatpush1.msra.mxu0 0.0
    %1428 = vmatprep.subr.mxu0 0.0
    %1429 = vmatpush1.msra.mxu0 0.0
    %1430 = vmatprep.subr.mxu0 0.0
    %1431 = vmatpush1.msra.mxu0 0.0
    %1432 = vmatprep.subr.mxu0 0.0
    %1433 = vmatpush1.msra.mxu0 0.0
    %1434 = vmatprep.subr.mxu0 0.0
    %1435 = vmatpush1.msra.mxu0 0.0
    %1436 = vmatprep.subr.mxu0 0.0
    %1437 = vmatpush1.msra.mxu0 0.0
    %1438 = vmatprep.subr.mxu0 0.0
    %1439 = vmatpush1.msra.mxu0 0.0
    %1440 = vmatprep.subr.mxu0 0.0
    %1441 = vmatpush1.msra.mxu0 0.0
    %1442 = vmatprep.subr.mxu0 0.0
    %1443 = vmatpush1.msra.mxu0 0.0
    %1444 = vmatprep.subr.mxu0 0.0
    %1445 = vmatpush1.msra.mxu0 0.0
    %1446 = vmatprep.subr.mxu0 0.0
    %1447 = vmatpush1.msra.mxu0 0.0
    %1448 = vmatprep.subr.mxu0 0.0
    %1449 = vmatpush1.msra.mxu0 0.0
    %1450 = vmatprep.subr.mxu0 0.0
    %1451 = vmatpush1.msra.mxu0 0.0
    %1452 = vmatprep.subr.mxu0 0.0
    %1453 = vmatpush1.msra.mxu0 0.0
    %v1454 = vand.u32 %v158, 4294901760
    %v1455 = vsub.f32 %v158, %v1454
    %1456 = vmatprep.subr.mxu0 %v1455
    %v1457 = vand.u32 %v157, 4294901760
    %v1458 = vsub.f32 %v157, %v1457
    %1459 = vmatpush1.msra.mxu0 %v1458
    %v1460 = vand.u32 %v156, 4294901760
    %v1461 = vsub.f32 %v156, %v1460
    %1462 = vmatprep.subr.mxu0 %v1461
    %v1463 = vand.u32 %v155, 4294901760
    %v1464 = vsub.f32 %v155, %v1463
    %1465 = vmatpush1.msra.mxu0 %v1464
    %1466 = vmatprep.subr.mxu0 0.0
    %1467 = vmatpush2.msra.mxu0 0.0
    %1468 = vmatprep.subr.mxu0 0.0
    %1469 = vmatpush2.msra.mxu0 0.0
    %1470 = vmatprep.subr.mxu0 0.0
    %1471 = vmatpush2.msra.mxu0 0.0
    %1472 = vmatprep.subr.mxu0 0.0
    %1473 = vmatpush2.msra.mxu0 0.0
    %1474 = vmatprep.subr.mxu0 0.0
    %1475 = vmatpush2.msra.mxu0 0.0
    %1476 = vmatprep.subr.mxu0 0.0
    %1477 = vmatpush2.msra.mxu0 0.0
    %1478 = vmatprep.subr.mxu0 0.0
    %1479 = vmatpush2.msra.mxu0 0.0
    %1480 = vmatprep.subr.mxu0 0.0
    %1481 = vmatpush2.msra.mxu0 0.0
    %1482 = vmatprep.subr.mxu0 0.0
    %1483 = vmatpush2.msra.mxu0 0.0
    %1484 = vmatprep.subr.mxu0 0.0
    %1485 = vmatpush2.msra.mxu0 0.0
    %1486 = vmatprep.subr.mxu0 0.0
    %1487 = vmatpush2.msra.mxu0 0.0
    %1488 = vmatprep.subr.mxu0 0.0
    %1489 = vmatpush2.msra.mxu0 0.0
    %1490 = vmatprep.subr.mxu0 0.0
    %1491 = vmatpush2.msra.mxu0 0.0
    %1492 = vmatprep.subr.mxu0 0.0
    %1493 = vmatpush2.msra.mxu0 0.0
    %1494 = vmatprep.subr.mxu0 0.0
    %1495 = vmatpush2.msra.mxu0 0.0
    %1496 = vmatprep.subr.mxu0 0.0
    %1497 = vmatpush2.msra.mxu0 0.0
    %1498 = vmatprep.mubr.f32.mxu0 0.0
    %v1499 = vand.u32 %v1105, 4294901760
    %v1500 = vsub.f32 %v1105, %v1499
    %1501 = vmatmul.mubr.f32.gmra.mxu0 %v1500
    %v1502 = vpop.f32.mrf.mxu0
    %v1503 = vadd.f32 %v1373, %v1502
    %v1504 = vpop.f32.mrf.mxu0
    %v1505 = vadd.f32 %v1375, %v1504
    %1506 = vmatprep.mubr.f32.mxu0 0.0
    %v1507 = vand.u32 %v1108, 4294901760
    %v1508 = vsub.f32 %v1108, %v1507
    %1509 = vmatmul.mubr.f32.gmra.mxu0 %v1508
    %v1510 = vpop.f32.mrf.mxu0
    %v1511 = vadd.f32 %v1380, %v1510
    %v1512 = vpop.f32.mrf.mxu0
    %v1513 = vadd.f32 %v1382, %v1512
    %1514 = vmatprep.mubr.f32.mxu0 0.0
    %v1515 = vand.u32 %v1111, 4294901760
    %v1516 = vsub.f32 %v1111, %v1515
    %1517 = vmatmul.mubr.f32.gmra.mxu0 %v1516
    %v1518 = vpop.f32.mrf.mxu0
    %v1519 = vadd.f32 %v1387, %v1518
    %v1520 = vpop.f32.mrf.mxu0
    %v1521 = vadd.f32 %v1389, %v1520
    %1522 = vmatprep.mubr.f32.mxu0 0.0
    %v1523 = vand.u32 %v1114, 4294901760
    %v1524 = vsub.f32 %v1114, %v1523
    %1525 = vmatmul.mubr.f32.gmra.mxu0 %v1524
    %v1526 = vpop.f32.mrf.mxu0
    %v1527 = vadd.f32 %v1394, %v1526
    %v1528 = vpop.f32.mrf.mxu0
    %v1529 = vadd.f32 %v1396, %v1528
    %1530 = vmatprep.mubr.f32.mxu0 0.0
    %v1531 = vand.u32 %v1117, 4294901760
    %v1532 = vsub.f32 %v1117, %v1531
    %1533 = vmatmul.mubr.f32.gmra.mxu0 %v1532
    %v1534 = vpop.f32.mrf.mxu0
    %v1535 = vadd.f32 %v1401, %v1534
    %v1536 = vpop.f32.mrf.mxu0
    %v1537 = vadd.f32 %v1403, %v1536
    %1538 = vmatprep.mubr.f32.mxu0 0.0
    %v1539 = vand.u32 %v1120, 4294901760
    %v1540 = vsub.f32 %v1120, %v1539
    %1541 = vmatmul.mubr.f32.gmra.mxu0 %v1540
    %v1542 = vpop.f32.mrf.mxu0
    %v1543 = vadd.f32 %v1408, %v1542
    %v1544 = vpop.f32.mrf.mxu0
    %v1545 = vadd.f32 %v1410, %v1544
    %1546 = vmatprep.mubr.f32.mxu0 0.0
    %v1547 = vand.u32 %v1123, 4294901760
    %v1548 = vsub.f32 %v1123, %v1547
    %1549 = vmatmul.mubr.f32.gmra.mxu0 %v1548
    %v1550 = vpop.f32.mrf.mxu0
    %v1551 = vadd.f32 %v1415, %v1550
    %v1552 = vpop.f32.mrf.mxu0
    %v1553 = vadd.f32 %v1417, %v1552
    %1554 = vmatprep.mubr.f32.mxu0 0.0
    %v1555 = vand.u32 %v1126, 4294901760
    %v1556 = vsub.f32 %v1126, %v1555
    %1557 = vmatmul.mubr.f32.gmra.mxu0 %v1556
    %v1558 = vpop.f32.mrf.mxu0
    %v1559 = vadd.f32 %v1422, %v1558
    %v1560 = vpop.f32.mrf.mxu0
    %v1561 = vadd.f32 %v1424, %v1560
    %1562 = vdwg.mxu0
    %1563 = vmatprep.subr.mxu0 0.0
    %1564 = vmatpush1.msra.mxu0 0.0
    %1565 = vmatprep.subr.mxu0 0.0
    %1566 = vmatpush1.msra.mxu0 0.0
    %1567 = vmatprep.subr.mxu0 0.0
    %1568 = vmatpush1.msra.mxu0 0.0
    %1569 = vmatprep.subr.mxu0 0.0
    %1570 = vmatpush1.msra.mxu0 0.0
    %1571 = vmatprep.subr.mxu0 0.0
    %1572 = vmatpush1.msra.mxu0 0.0
    %1573 = vmatprep.subr.mxu0 0.0
    %1574 = vmatpush1.msra.mxu0 0.0
    %1575 = vmatprep.subr.mxu0 0.0
    %1576 = vmatpush1.msra.mxu0 0.0
    %1577 = vmatprep.subr.mxu0 0.0
    %1578 = vmatpush1.msra.mxu0 0.0
    %1579 = vmatprep.subr.mxu0 0.0
    %1580 = vmatpush1.msra.mxu0 0.0
    %1581 = vmatprep.subr.mxu0 0.0
    %1582 = vmatpush1.msra.mxu0 0.0
    %1583 = vmatprep.subr.mxu0 0.0
    %1584 = vmatpush1.msra.mxu0 0.0
    %1585 = vmatprep.subr.mxu0 0.0
    %1586 = vmatpush1.msra.mxu0 0.0
    %1587 = vmatprep.subr.mxu0 0.0
    %1588 = vmatpush1.msra.mxu0 0.0
    %1589 = vmatprep.subr.mxu0 0.0
    %1590 = vmatpush1.msra.mxu0 0.0
    %v1591 = vand.u32 %v158, 4294901760
    %1592 = vmatprep.subr.mxu0 %v1591
    %v1593 = vand.u32 %v157, 4294901760
    %1594 = vmatpush1.msra.mxu0 %v1593
    %v1595 = vand.u32 %v156, 4294901760
    %1596 = vmatprep.subr.mxu0 %v1595
    %v1597 = vand.u32 %v155, 4294901760
    %1598 = vmatpush1.msra.mxu0 %v1597
    %1599 = vmatprep.subr.mxu0 0.0
    %1600 = vmatpush2.msra.mxu0 0.0
    %1601 = vmatprep.subr.mxu0 0.0
    %1602 = vmatpush2.msra.mxu0 0.0
    %1603 = vmatprep.subr.mxu0 0.0
    %1604 = vmatpush2.msra.mxu0 0.0
    %1605 = vmatprep.subr.mxu0 0.0
    %1606 = vmatpush2.msra.mxu0 0.0
    %1607 = vmatprep.subr.mxu0 0.0
    %1608 = vmatpush2.msra.mxu0 0.0
    %1609 = vmatprep.subr.mxu0 0.0
    %1610 = vmatpush2.msra.mxu0 0.0
    %1611 = vmatprep.subr.mxu0 0.0
    %1612 = vmatpush2.msra.mxu0 0.0
    %1613 = vmatprep.subr.mxu0 0.0
    %1614 = vmatpush2.msra.mxu0 0.0
    %1615 = vmatprep.subr.mxu0 0.0
    %1616 = vmatpush2.msra.mxu0 0.0
    %1617 = vmatprep.subr.mxu0 0.0
    %1618 = vmatpush2.msra.mxu0 0.0
    %1619 = vmatprep.subr.mxu0 0.0
    %1620 = vmatpush2.msra.mxu0 0.0
    %1621 = vmatprep.subr.mxu0 0.0
    %1622 = vmatpush2.msra.mxu0 0.0
    %1623 = vmatprep.subr.mxu0 0.0
    %1624 = vmatpush2.msra.mxu0 0.0
    %1625 = vmatprep.subr.mxu0 0.0
    %1626 = vmatpush2.msra.mxu0 0.0
    %1627 = vmatprep.subr.mxu0 0.0
    %1628 = vmatpush2.msra.mxu0 0.0
    %1629 = vmatprep.subr.mxu0 0.0
    %1630 = vmatpush2.msra.mxu0 0.0
    %1631 = vmatprep.mubr.f32.mxu0 0.0
    %v1632 = vand.u32 %v1105, 4294901760
    %v1633 = vsub.f32 %v1105, %v1632
    %v1634 = vand.u32 %v1633, 4294901760
    %1635 = vmatmul.mubr.f32.gmra.mxu0 %v1634
    %v1636 = vpop.f32.mrf.mxu0
    %v1637 = vadd.f32 %v1503, %v1636
    %v1638 = vpop.f32.mrf.mxu0
    %v1639 = vadd.f32 %v1505, %v1638
    %1640 = vmatprep.mubr.f32.mxu0 0.0
    %v1641 = vand.u32 %v1108, 4294901760
    %v1642 = vsub.f32 %v1108, %v1641
    %v1643 = vand.u32 %v1642, 4294901760
    %1644 = vmatmul.mubr.f32.gmra.mxu0 %v1643
    %v1645 = vpop.f32.mrf.mxu0
    %v1646 = vadd.f32 %v1511, %v1645
    %v1647 = vpop.f32.mrf.mxu0
    %v1648 = vadd.f32 %v1513, %v1647
    %1649 = vmatprep.mubr.f32.mxu0 0.0
    %v1650 = vand.u32 %v1111, 4294901760
    %v1651 = vsub.f32 %v1111, %v1650
    %v1652 = vand.u32 %v1651, 4294901760
    %1653 = vmatmul.mubr.f32.gmra.mxu0 %v1652
    %v1654 = vpop.f32.mrf.mxu0
    %v1655 = vadd.f32 %v1519, %v1654
    %v1656 = vpop.f32.mrf.mxu0
    %v1657 = vadd.f32 %v1521, %v1656
    %1658 = vmatprep.mubr.f32.mxu0 0.0
    %v1659 = vand.u32 %v1114, 4294901760
    %v1660 = vsub.f32 %v1114, %v1659
    %v1661 = vand.u32 %v1660, 4294901760
    %1662 = vmatmul.mubr.f32.gmra.mxu0 %v1661
    %v1663 = vpop.f32.mrf.mxu0
    %v1664 = vadd.f32 %v1527, %v1663
    %v1665 = vpop.f32.mrf.mxu0
    %v1666 = vadd.f32 %v1529, %v1665
    %1667 = vmatprep.mubr.f32.mxu0 0.0
    %v1668 = vand.u32 %v1117, 4294901760
    %v1669 = vsub.f32 %v1117, %v1668
    %v1670 = vand.u32 %v1669, 4294901760
    %1671 = vmatmul.mubr.f32.gmra.mxu0 %v1670
    %v1672 = vpop.f32.mrf.mxu0
    %v1673 = vadd.f32 %v1535, %v1672
    %v1674 = vpop.f32.mrf.mxu0
    %v1675 = vadd.f32 %v1537, %v1674
    %1676 = vmatprep.mubr.f32.mxu0 0.0
    %v1677 = vand.u32 %v1120, 4294901760
    %v1678 = vsub.f32 %v1120, %v1677
    %v1679 = vand.u32 %v1678, 4294901760
    %1680 = vmatmul.mubr.f32.gmra.mxu0 %v1679
    %v1681 = vpop.f32.mrf.mxu0
    %v1682 = vadd.f32 %v1543, %v1681
    %v1683 = vpop.f32.mrf.mxu0
    %v1684 = vadd.f32 %v1545, %v1683
    %1685 = vmatprep.mubr.f32.mxu0 0.0
    %v1686 = vand.u32 %v1123, 4294901760
    %v1687 = vsub.f32 %v1123, %v1686
    %v1688 = vand.u32 %v1687, 4294901760
    %1689 = vmatmul.mubr.f32.gmra.mxu0 %v1688
    %v1690 = vpop.f32.mrf.mxu0
    %v1691 = vadd.f32 %v1551, %v1690
    %v1692 = vpop.f32.mrf.mxu0
    %v1693 = vadd.f32 %v1553, %v1692
    %1694 = vmatprep.mubr.f32.mxu0 0.0
    %v1695 = vand.u32 %v1126, 4294901760
    %v1696 = vsub.f32 %v1126, %v1695
    %v1697 = vand.u32 %v1696, 4294901760
    %1698 = vmatmul.mubr.f32.gmra.mxu0 %v1697
    %v1699 = vpop.f32.mrf.mxu0
    %v1700 = vadd.f32 %v1559, %v1699
    %v1701 = vpop.f32.mrf.mxu0
    %v1702 = vadd.f32 %v1561, %v1701
    %1703 = vdwg.mxu0
    %1704 = vmatprep.subr.mxu0 0.0
    %1705 = vmatpush1.msra.mxu0 0.0
    %1706 = vmatprep.subr.mxu0 0.0
    %1707 = vmatpush1.msra.mxu0 0.0
    %1708 = vmatprep.subr.mxu0 0.0
    %1709 = vmatpush1.msra.mxu0 0.0
    %1710 = vmatprep.subr.mxu0 0.0
    %1711 = vmatpush1.msra.mxu0 0.0
    %1712 = vmatprep.subr.mxu0 0.0
    %1713 = vmatpush1.msra.mxu0 0.0
    %1714 = vmatprep.subr.mxu0 0.0
    %1715 = vmatpush1.msra.mxu0 0.0
    %1716 = vmatprep.subr.mxu0 0.0
    %1717 = vmatpush1.msra.mxu0 0.0
    %1718 = vmatprep.subr.mxu0 0.0
    %1719 = vmatpush1.msra.mxu0 0.0
    %1720 = vmatprep.subr.mxu0 0.0
    %1721 = vmatpush1.msra.mxu0 0.0
    %1722 = vmatprep.subr.mxu0 0.0
    %1723 = vmatpush1.msra.mxu0 0.0
    %1724 = vmatprep.subr.mxu0 0.0
    %1725 = vmatpush1.msra.mxu0 0.0
    %1726 = vmatprep.subr.mxu0 0.0
    %1727 = vmatpush1.msra.mxu0 0.0
    %1728 = vmatprep.subr.mxu0 0.0
    %1729 = vmatpush1.msra.mxu0 0.0
    %1730 = vmatprep.subr.mxu0 0.0
    %1731 = vmatpush1.msra.mxu0 0.0
    %v1732 = vand.u32 %v158, 4294901760
    %v1733 = vsub.f32 %v158, %v1732
    %v1734 = vand.u32 %v1733, 4294901760
    %1735 = vmatprep.subr.mxu0 %v1734
    %v1736 = vand.u32 %v157, 4294901760
    %v1737 = vsub.f32 %v157, %v1736
    %v1738 = vand.u32 %v1737, 4294901760
    %1739 = vmatpush1.msra.mxu0 %v1738
    %v1740 = vand.u32 %v156, 4294901760
    %v1741 = vsub.f32 %v156, %v1740
    %v1742 = vand.u32 %v1741, 4294901760
    %1743 = vmatprep.subr.mxu0 %v1742
    %v1744 = vand.u32 %v155, 4294901760
    %v1745 = vsub.f32 %v155, %v1744
    %v1746 = vand.u32 %v1745, 4294901760
    %1747 = vmatpush1.msra.mxu0 %v1746
    %1748 = vmatprep.subr.mxu0 0.0
    %1749 = vmatpush2.msra.mxu0 0.0
    %1750 = vmatprep.subr.mxu0 0.0
    %1751 = vmatpush2.msra.mxu0 0.0
    %1752 = vmatprep.subr.mxu0 0.0
    %1753 = vmatpush2.msra.mxu0 0.0
    %1754 = vmatprep.subr.mxu0 0.0
    %1755 = vmatpush2.msra.mxu0 0.0
    %1756 = vmatprep.subr.mxu0 0.0
    %1757 = vmatpush2.msra.mxu0 0.0
    %1758 = vmatprep.subr.mxu0 0.0
    %1759 = vmatpush2.msra.mxu0 0.0
    %1760 = vmatprep.subr.mxu0 0.0
    %1761 = vmatpush2.msra.mxu0 0.0
    %1762 = vmatprep.subr.mxu0 0.0
    %1763 = vmatpush2.msra.mxu0 0.0
    %1764 = vmatprep.subr.mxu0 0.0
    %1765 = vmatpush2.msra.mxu0 0.0
    %1766 = vmatprep.subr.mxu0 0.0
    %1767 = vmatpush2.msra.mxu0 0.0
    %1768 = vmatprep.subr.mxu0 0.0
    %1769 = vmatpush2.msra.mxu0 0.0
    %1770 = vmatprep.subr.mxu0 0.0
    %1771 = vmatpush2.msra.mxu0 0.0
    %1772 = vmatprep.subr.mxu0 0.0
    %1773 = vmatpush2.msra.mxu0 0.0
    %1774 = vmatprep.subr.mxu0 0.0
    %1775 = vmatpush2.msra.mxu0 0.0
    %1776 = vmatprep.subr.mxu0 0.0
    %1777 = vmatpush2.msra.mxu0 0.0
    %1778 = vmatprep.subr.mxu0 0.0
    %1779 = vmatpush2.msra.mxu0 0.0
    %1780 = vmatprep.mubr.f32.mxu0 0.0
    %v1781 = vand.u32 %v1105, 4294901760
    %1782 = vmatmul.mubr.f32.gmra.mxu0 %v1781
    %v1783 = vpop.f32.mrf.mxu0
    %v1784 = vadd.f32 %v1637, %v1783
    %v1785 = vpop.f32.mrf.mxu0
    %v1786 = vadd.f32 %v1639, %v1785
    %1787 = vmatprep.mubr.f32.mxu0 0.0
    %v1788 = vand.u32 %v1108, 4294901760
    %1789 = vmatmul.mubr.f32.gmra.mxu0 %v1788
    %v1790 = vpop.f32.mrf.mxu0
    %v1791 = vadd.f32 %v1646, %v1790
    %v1792 = vpop.f32.mrf.mxu0
    %v1793 = vadd.f32 %v1648, %v1792
    %1794 = vmatprep.mubr.f32.mxu0 0.0
    %v1795 = vand.u32 %v1111, 4294901760
    %1796 = vmatmul.mubr.f32.gmra.mxu0 %v1795
    %v1797 = vpop.f32.mrf.mxu0
    %v1798 = vadd.f32 %v1655, %v1797
    %v1799 = vpop.f32.mrf.mxu0
    %v1800 = vadd.f32 %v1657, %v1799
    %1801 = vmatprep.mubr.f32.mxu0 0.0
    %v1802 = vand.u32 %v1114, 4294901760
    %1803 = vmatmul.mubr.f32.gmra.mxu0 %v1802
    %v1804 = vpop.f32.mrf.mxu0
    %v1805 = vadd.f32 %v1664, %v1804
    %v1806 = vpop.f32.mrf.mxu0
    %v1807 = vadd.f32 %v1666, %v1806
    %1808 = vmatprep.mubr.f32.mxu0 0.0
    %v1809 = vand.u32 %v1117, 4294901760
    %1810 = vmatmul.mubr.f32.gmra.mxu0 %v1809
    %v1811 = vpop.f32.mrf.mxu0
    %v1812 = vadd.f32 %v1673, %v1811
    %v1813 = vpop.f32.mrf.mxu0
    %v1814 = vadd.f32 %v1675, %v1813
    %1815 = vmatprep.mubr.f32.mxu0 0.0
    %v1816 = vand.u32 %v1120, 4294901760
    %1817 = vmatmul.mubr.f32.gmra.mxu0 %v1816
    %v1818 = vpop.f32.mrf.mxu0
    %v1819 = vadd.f32 %v1682, %v1818
    %v1820 = vpop.f32.mrf.mxu0
    %v1821 = vadd.f32 %v1684, %v1820
    %1822 = vmatprep.mubr.f32.mxu0 0.0
    %v1823 = vand.u32 %v1123, 4294901760
    %1824 = vmatmul.mubr.f32.gmra.mxu0 %v1823
    %v1825 = vpop.f32.mrf.mxu0
    %v1826 = vadd.f32 %v1691, %v1825
    %v1827 = vpop.f32.mrf.mxu0
    %v1828 = vadd.f32 %v1693, %v1827
    %1829 = vmatprep.mubr.f32.mxu0 0.0
    %v1830 = vand.u32 %v1126, 4294901760
    %1831 = vmatmul.mubr.f32.gmra.mxu0 %v1830
    %v1832 = vpop.f32.mrf.mxu0
    %v1833 = vadd.f32 %v1700, %v1832
    %v1834 = vpop.f32.mrf.mxu0
    %v1835 = vadd.f32 %v1702, %v1834
    %1836 = vdwg.mxu0
    %1837 = vmatprep.subr.mxu0 0.0
    %1838 = vmatpush1.msra.mxu0 0.0
    %1839 = vmatprep.subr.mxu0 0.0
    %1840 = vmatpush1.msra.mxu0 0.0
    %1841 = vmatprep.subr.mxu0 0.0
    %1842 = vmatpush1.msra.mxu0 0.0
    %1843 = vmatprep.subr.mxu0 0.0
    %1844 = vmatpush1.msra.mxu0 0.0
    %1845 = vmatprep.subr.mxu0 0.0
    %1846 = vmatpush1.msra.mxu0 0.0
    %1847 = vmatprep.subr.mxu0 0.0
    %1848 = vmatpush1.msra.mxu0 0.0
    %1849 = vmatprep.subr.mxu0 0.0
    %1850 = vmatpush1.msra.mxu0 0.0
    %1851 = vmatprep.subr.mxu0 0.0
    %1852 = vmatpush1.msra.mxu0 0.0
    %1853 = vmatprep.subr.mxu0 0.0
    %1854 = vmatpush1.msra.mxu0 0.0
    %1855 = vmatprep.subr.mxu0 0.0
    %1856 = vmatpush1.msra.mxu0 0.0
    %1857 = vmatprep.subr.mxu0 0.0
    %1858 = vmatpush1.msra.mxu0 0.0
    %1859 = vmatprep.subr.mxu0 0.0
    %1860 = vmatpush1.msra.mxu0 0.0
    %1861 = vmatprep.subr.mxu0 0.0
    %1862 = vmatpush1.msra.mxu0 0.0
    %1863 = vmatprep.subr.mxu0 0.0
    %1864 = vmatpush1.msra.mxu0 0.0
    %v1865 = vand.u32 %v158, 4294901760
    %1866 = vmatprep.subr.mxu0 %v1865
    %v1867 = vand.u32 %v157, 4294901760
    %1868 = vmatpush1.msra.mxu0 %v1867
    %v1869 = vand.u32 %v156, 4294901760
    %1870 = vmatprep.subr.mxu0 %v1869
    %v1871 = vand.u32 %v155, 4294901760
    %1872 = vmatpush1.msra.mxu0 %v1871
    %1873 = vmatprep.subr.mxu0 0.0
    %1874 = vmatpush2.msra.mxu0 0.0
    %1875 = vmatprep.subr.mxu0 0.0
    %1876 = vmatpush2.msra.mxu0 0.0
    %1877 = vmatprep.subr.mxu0 0.0
    %1878 = vmatpush2.msra.mxu0 0.0
    %1879 = vmatprep.subr.mxu0 0.0
    %1880 = vmatpush2.msra.mxu0 0.0
    %1881 = vmatprep.subr.mxu0 0.0
    %1882 = vmatpush2.msra.mxu0 0.0
    %1883 = vmatprep.subr.mxu0 0.0
    %1884 = vmatpush2.msra.mxu0 0.0
    %1885 = vmatprep.subr.mxu0 0.0
    %1886 = vmatpush2.msra.mxu0 0.0
    %1887 = vmatprep.subr.mxu0 0.0
    %1888 = vmatpush2.msra.mxu0 0.0
    %1889 = vmatprep.subr.mxu0 0.0
    %1890 = vmatpush2.msra.mxu0 0.0
    %1891 = vmatprep.subr.mxu0 0.0
    %1892 = vmatpush2.msra.mxu0 0.0
    %1893 = vmatprep.subr.mxu0 0.0
    %1894 = vmatpush2.msra.mxu0 0.0
    %1895 = vmatprep.subr.mxu0 0.0
    %1896 = vmatpush2.msra.mxu0 0.0
    %1897 = vmatprep.subr.mxu0 0.0
    %1898 = vmatpush2.msra.mxu0 0.0
    %1899 = vmatprep.subr.mxu0 0.0
    %1900 = vmatpush2.msra.mxu0 0.0
    %1901 = vmatprep.subr.mxu0 0.0
    %1902 = vmatpush2.msra.mxu0 0.0
    %1903 = vmatprep.subr.mxu0 0.0
    %1904 = vmatpush2.msra.mxu0 0.0
    %1905 = vmatprep.mubr.f32.mxu0 0.0
    %v1906 = vand.u32 %v1105, 4294901760
    %1907 = vmatmul.mubr.f32.gmra.mxu0 %v1906
    %v1908 = vpop.f32.mrf.mxu0
    %v1909 = vadd.f32 %v1784, %v1908
    %v1910 = vpop.f32.mrf.mxu0
    %v1911 = vadd.f32 %v1786, %v1910
    %1912 = vmatprep.mubr.f32.mxu0 0.0
    %v1913 = vand.u32 %v1108, 4294901760
    %1914 = vmatmul.mubr.f32.gmra.mxu0 %v1913
    %v1915 = vpop.f32.mrf.mxu0
    %v1916 = vadd.f32 %v1791, %v1915
    %v1917 = vpop.f32.mrf.mxu0
    %v1918 = vadd.f32 %v1793, %v1917
    %1919 = vmatprep.mubr.f32.mxu0 0.0
    %v1920 = vand.u32 %v1111, 4294901760
    %1921 = vmatmul.mubr.f32.gmra.mxu0 %v1920
    %v1922 = vpop.f32.mrf.mxu0
    %v1923 = vadd.f32 %v1798, %v1922
    %v1924 = vpop.f32.mrf.mxu0
    %v1925 = vadd.f32 %v1800, %v1924
    %1926 = vmatprep.mubr.f32.mxu0 0.0
    %v1927 = vand.u32 %v1114, 4294901760
    %1928 = vmatmul.mubr.f32.gmra.mxu0 %v1927
    %v1929 = vpop.f32.mrf.mxu0
    %v1930 = vadd.f32 %v1805, %v1929
    %v1931 = vpop.f32.mrf.mxu0
    %v1932 = vadd.f32 %v1807, %v1931
    %1933 = vmatprep.mubr.f32.mxu0 0.0
    %v1934 = vand.u32 %v1117, 4294901760
    %1935 = vmatmul.mubr.f32.gmra.mxu0 %v1934
    %v1936 = vpop.f32.mrf.mxu0
    %v1937 = vadd.f32 %v1812, %v1936
    %v1938 = vpop.f32.mrf.mxu0
    %v1939 = vadd.f32 %v1814, %v1938
    %1940 = vmatprep.mubr.f32.mxu0 0.0
    %v1941 = vand.u32 %v1120, 4294901760
    %1942 = vmatmul.mubr.f32.gmra.mxu0 %v1941
    %v1943 = vpop.f32.mrf.mxu0
    %v1944 = vadd.f32 %v1819, %v1943
    %v1945 = vpop.f32.mrf.mxu0
    %v1946 = vadd.f32 %v1821, %v1945
    %1947 = vmatprep.mubr.f32.mxu0 0.0
    %v1948 = vand.u32 %v1123, 4294901760
    %1949 = vmatmul.mubr.f32.gmra.mxu0 %v1948
    %v1950 = vpop.f32.mrf.mxu0
    %v1951 = vadd.f32 %v1826, %v1950
    %v1952 = vpop.f32.mrf.mxu0
    %v1953 = vadd.f32 %v1828, %v1952
    %1954 = vmatprep.mubr.f32.mxu0 0.0
    %v1955 = vand.u32 %v1126, 4294901760
    %1956 = vmatmul.mubr.f32.gmra.mxu0 %v1955
    %v1957 = vpop.f32.mrf.mxu0
    %v1958 = vadd.f32 %v1833, %v1957
    %v1959 = vpop.f32.mrf.mxu0
    %v1960 = vadd.f32 %v1835, %v1959
    %1961 = vdwg.mxu0
    %v1962 = vmul.f32 %v1051, %v221
    %v1963 = vmul.f32 %v1053, %v222
    %v1964 = vmul.f32 %v1058, %v223
    %v1965 = vmul.f32 %v1060, %v224
    %v1966 = vmul.f32 %v1909, %v225
    %v1967 = vmul.f32 %v1911, %v226
    %v1968 = vmul.f32 %v1916, %v227
    %v1969 = vmul.f32 %v1918, %v228
    %v1970 = vadd.f32 %v1962, %v1964
    %v1971 = vrot.slane %v1970, 4
    %v1972 = vadd.f32 %v1970, %v1971
    %v1973 = vrot.slane %v1972, 2
    %v1974 = vadd.f32 %v1972, %v1973
    %v1975 = vrot.slane %v1974, 1
    %v1976 = vadd.f32 %v1974, %v1975
    %v1977 = vadd.f32 %v1963, %v1965
    %v1978 = vrot.slane %v1977, 4
    %v1979 = vadd.f32 %v1977, %v1978
    %v1980 = vrot.slane %v1979, 2
    %v1981 = vadd.f32 %v1979, %v1980
    %v1982 = vrot.slane %v1981, 1
    %v1983 = vadd.f32 %v1981, %v1982
    %v1984 = vadd.f32 %v1966, %v1968
    %v1985 = vrot.slane %v1984, 4
    %v1986 = vadd.f32 %v1984, %v1985
    %v1987 = vrot.slane %v1986, 2
    %v1988 = vadd.f32 %v1986, %v1987
    %v1989 = vrot.slane %v1988, 1
    %v1990 = vadd.f32 %v1988, %v1989
    %v1991 = vadd.f32 %v1967, %v1969
    %v1992 = vrot.slane %v1991, 4
    %v1993 = vadd.f32 %v1991, %v1992
    %v1994 = vrot.slane %v1993, 2
    %v1995 = vadd.f32 %v1993, %v1994
    %v1996 = vrot.slane %v1995, 1
    %v1997 = vadd.f32 %v1995, %v1996
    %v1998 = vmul.f32 %v1065, %v221
    %v1999 = vmul.f32 %v1067, %v222
    %v2000 = vmul.f32 %v1072, %v223
    %v2001 = vmul.f32 %v1074, %v224
    %v2002 = vmul.f32 %v1923, %v225
    %v2003 = vmul.f32 %v1925, %v226
    %v2004 = vmul.f32 %v1930, %v227
    %v2005 = vmul.f32 %v1932, %v228
    %v2006 = vadd.f32 %v1998, %v2000
    %v2007 = vrot.slane %v2006, 4
    %v2008 = vadd.f32 %v2006, %v2007
    %v2009 = vrot.slane %v2008, 2
    %v2010 = vadd.f32 %v2008, %v2009
    %v2011 = vrot.slane %v2010, 1
    %v2012 = vadd.f32 %v2010, %v2011
    %v2013 = vadd.f32 %v1999, %v2001
    %v2014 = vrot.slane %v2013, 4
    %v2015 = vadd.f32 %v2013, %v2014
    %v2016 = vrot.slane %v2015, 2
    %v2017 = vadd.f32 %v2015, %v2016
    %v2018 = vrot.slane %v2017, 1
    %v2019 = vadd.f32 %v2017, %v2018
    %v2020 = vadd.f32 %v2002, %v2004
    %v2021 = vrot.slane %v2020, 4
    %v2022 = vadd.f32 %v2020, %v2021
    %v2023 = vrot.slane %v2022, 2
    %v2024 = vadd.f32 %v2022, %v2023
    %v2025 = vrot.slane %v2024, 1
    %v2026 = vadd.f32 %v2024, %v2025
    %v2027 = vadd.f32 %v2003, %v2005
    %v2028 = vrot.slane %v2027, 4
    %v2029 = vadd.f32 %v2027, %v2028
    %v2030 = vrot.slane %v2029, 2
    %v2031 = vadd.f32 %v2029, %v2030
    %v2032 = vrot.slane %v2031, 1
    %v2033 = vadd.f32 %v2031, %v2032
    %v2034 = vmul.f32 %v1079, %v221
    %v2035 = vmul.f32 %v1081, %v222
    %v2036 = vmul.f32 %v1086, %v223
    %v2037 = vmul.f32 %v1088, %v224
    %v2038 = vmul.f32 %v1937, %v225
    %v2039 = vmul.f32 %v1939, %v226
    %v2040 = vmul.f32 %v1944, %v227
    %v2041 = vmul.f32 %v1946, %v228
    %v2042 = vadd.f32 %v2034, %v2036
    %v2043 = vrot.slane %v2042, 4
    %v2044 = vadd.f32 %v2042, %v2043
    %v2045 = vrot.slane %v2044, 2
    %v2046 = vadd.f32 %v2044, %v2045
    %v2047 = vrot.slane %v2046, 1
    %v2048 = vadd.f32 %v2046, %v2047
    %v2049 = vadd.f32 %v2035, %v2037
    %v2050 = vrot.slane %v2049, 4
    %v2051 = vadd.f32 %v2049, %v2050
    %v2052 = vrot.slane %v2051, 2
    %v2053 = vadd.f32 %v2051, %v2052
    %v2054 = vrot.slane %v2053, 1
    %v2055 = vadd.f32 %v2053, %v2054
    %v2056 = vadd.f32 %v2038, %v2040
    %v2057 = vrot.slane %v2056, 4
    %v2058 = vadd.f32 %v2056, %v2057
    %v2059 = vrot.slane %v2058, 2
    %v2060 = vadd.f32 %v2058, %v2059
    %v2061 = vrot.slane %v2060, 1
    %v2062 = vadd.f32 %v2060, %v2061
    %v2063 = vadd.f32 %v2039, %v2041
    %v2064 = vrot.slane %v2063, 4
    %v2065 = vadd.f32 %v2063, %v2064
    %v2066 = vrot.slane %v2065, 2
    %v2067 = vadd.f32 %v2065, %v2066
    %v2068 = vrot.slane %v2067, 1
    %v2069 = vadd.f32 %v2067, %v2068
    %v2070 = vmul.f32 %v1093, %v221
    %v2071 = vmul.f32 %v1095, %v222
    %v2072 = vmul.f32 %v1100, %v223
    %v2073 = vmul.f32 %v1102, %v224
    %v2074 = vmul.f32 %v1951, %v225
    %v2075 = vmul.f32 %v1953, %v226
    %v2076 = vmul.f32 %v1958, %v227
    %v2077 = vmul.f32 %v1960, %v228
    %v2078 = vadd.f32 %v2070, %v2072
    %v2079 = vrot.slane %v2078, 4
    %v2080 = vadd.f32 %v2078, %v2079
    %v2081 = vrot.slane %v2080, 2
    %v2082 = vadd.f32 %v2080, %v2081
    %v2083 = vrot.slane %v2082, 1
    %v2084 = vadd.f32 %v2082, %v2083
    %v2085 = vadd.f32 %v2071, %v2073
    %v2086 = vrot.slane %v2085, 4
    %v2087 = vadd.f32 %v2085, %v2086
    %v2088 = vrot.slane %v2087, 2
    %v2089 = vadd.f32 %v2087, %v2088
    %v2090 = vrot.slane %v2089, 1
    %v2091 = vadd.f32 %v2089, %v2090
    %v2092 = vadd.f32 %v2074, %v2076
    %v2093 = vrot.slane %v2092, 4
    %v2094 = vadd.f32 %v2092, %v2093
    %v2095 = vrot.slane %v2094, 2
    %v2096 = vadd.f32 %v2094, %v2095
    %v2097 = vrot.slane %v2096, 1
    %v2098 = vadd.f32 %v2096, %v2097
    %v2099 = vadd.f32 %v2075, %v2077
    %v2100 = vrot.slane %v2099, 4
    %v2101 = vadd.f32 %v2099, %v2100
    %v2102 = vrot.slane %v2101, 2
    %v2103 = vadd.f32 %v2101, %v2102
    %v2104 = vrot.slane %v2103, 1
    %v2105 = vadd.f32 %v2103, %v2104
    %vm2106 = vcmask 1040384
    %v2107 = vsel %vm2106, %v1976, %v2012
    %v2108 = vsel %vm2106, %v1983, %v2019
    %v2109 = vsel %vm2106, %v1990, %v2026
    %v2110 = vsel %vm2106, %v1997, %v2033
    %vm2111 = vcmask 1041408
    %v2112 = vsel %vm2111, %v2107, %v2048
    %v2113 = vsel %vm2111, %v2108, %v2055
    %v2114 = vsel %vm2111, %v2109, %v2062
    %v2115 = vsel %vm2111, %v2110, %v2069
    %vm2116 = vcmask 1042432
    %v2117 = vsel %vm2116, %v2112, %v2084
    %v2118 = vsel %vm2116, %v2113, %v2091
    %v2119 = vsel %vm2116, %v2114, %v2098
    %v2120 = vsel %vm2116, %v2115, %v2105
    %v2125 = vcombine.low %v2117, %v2118
    %v2126 = vcombine.low %v2119, %v2120
    %2129 = vst [vmem:[#allocation2] sm:$0xff] %v2125
    %2130 = vst [vmem:[#allocation2 + $0x8] sm:$0xff] %v2126
    // Predicated region
    $region10: #{tpu_custom_call.1} parent=1 // pred_check
      _
    $region11: #{tpu_custom_call.1} parent=1 // pred_check_branch
      %2132 = sbr.rel (0) target = $region13
    $region12: #{tpu_custom_call.1} parent=1 // pred_region
      %s2134 = ssub.s32 256, 256
      %2135 = vsyncadd [#allocation3], %s2134
      %s2136 = sshll.u32 [#allocation2], 4
      %s2137 = int_to_ptr.vmem [resolvable:$true] %s2136
      %2142 = dma.vmem_to_hbm [thread:$0]  %s2137, 256, %s2, [#allocation3], 128, 128, 8
    $region13: #{tpu_custom_call.1} parent=1 // pred_fallthru
      _
    // Predicated region
    $region14: #{tpu_custom_call.1} parent=1 // pred_check
      _
    $region15: #{tpu_custom_call.1} parent=1 // pred_check_branch
      %2144 = sbr.rel (0) target = $region17
    $region16: #{tpu_custom_call.1} parent=1 // pred_region
      %2145 = dma.done [#allocation3], 256
    $region17: #{tpu_custom_call.1} parent=1 // pred_fallthru
      _
    %2146 = vsyncpa [#allocation3], 1

</llo_original>
